<compile_context>
chip_gen: v7x
topology: tpu7x:2x2x1
jax: 0.10.0
libtpu: 0.0.40
codegen_flags: <defaults>
</compile_context>

<pallas_src>
import numpy as np
import jax
import jax.numpy as jnp
from jax.experimental import pallas as pl
from jax.experimental.pallas import tpu as pltpu


def _round_up(x: int, m: int) -> int:
    return (x + m - 1) // m * m


def _vmem_capacity_bytes() -> int:
    """Per-core VMEM capacity; conservative (v7x-sized) fallback if the query fails."""
    try:
        return int(pltpu.get_tpu_info().vmem_capacity_bytes)
    except Exception:
        return 64 * 1024 * 1024


def _spatial_conv_kernel(a_ref, x_ref, o_ref):
    # a_ref: (CWp, CVp) bf16 fused weight (+bias column); constant block index -> resident.
    # x_ref: (CVp, TM)  bf16 input tile; M = N*T sits on the 128-lane (last) axis.
    # o_ref: (CWp, TM)  f32 lane-dense output tile.
    o_ref[...] = jnp.dot(
        a_ref[...], x_ref[...], preferred_element_type=jnp.float32
    ).astype(o_ref.dtype)


def spatial_conv(x, conv_weight, conv_bias, adj, kernel_size, *, tm=None, tm_cap=4096):
    """SpatialConv forward (t_kernel_size=1 path).

    x:           (N, C_in, T, V)  float32
    conv_weight: (K*C_out, C_in)  float32   (the 1x1 Conv2d weight, squeezed)
    conv_bias:   (K*C_out,)       float32
    adj:         (K, V, W)        float32
    returns:     (N, C_out, T, W) float32
    """
    # TODO(synk): t_kernel_size > 1 (reflect-padded temporal conv) is not implemented;
    # this kernel covers the module's default t_kernel_size=1 path only.
    N, C_in, T, V = x.shape
    K, Va, W = adj.shape
    assert K == kernel_size, f"adj.shape[0]={K} != kernel_size={kernel_size}"
    assert Va == V, f"vertex dim mismatch: {Va} vs {V}"
    KC, C_in_w = conv_weight.shape
    assert C_in_w == C_in and KC % K == 0
    C_out = KC // K

    # ---- one-off weight transform: fold 1x1 conv + graph contraction + bias ----
    # TODO(synk): for large channel counts (C_in/C_out >= ~64) this fusion inflates
    # matmul FLOPs by ~W/K and the fused weight may stop fitting VMEM (worst on v7x);
    # in that regime switch to an unfused (K*C_out x C_in) conv matmul inside the
    # kernel with the tiny per-k adj contraction applied on the tile before writeback.
    Wm = conv_weight.reshape(K, C_out, C_in).astype(jnp.float32)
    b = conv_bias.reshape(K, C_out).astype(jnp.float32)
    adjf = adj.astype(jnp.float32)
    A = jnp.einsum("kcq,kvw->cwqv", Wm, adjf).reshape(C_out * W, C_in * V)
    Bv = jnp.einsum("kc,kw->cw", b, adjf.sum(axis=1)).reshape(C_out * W)

    CV, CW = C_in * V, C_out * W
    CV1 = CV + 1                       # +1 "ones" row carries the bias through the MXU
    CVp = _round_up(CV1, 16)           # bf16 sublane packing
    CWp = _round_up(CW, 16)

    A_f = jnp.zeros((CWp, CVp), jnp.float32)
    A_f = A_f.at[:CW, :CV].set(A).at[:CW, CV].set(Bv)
    A_f = A_f.astype(jnp.bfloat16)

    # (N,C_in,T,V) -> (C_in,V,N,T) -> (C_in*V, M): big M = N*T on the lane axis.
    # TODO(synk): these HBM-level transpose/pad copies (and the output transpose below)
    # are extra full passes for a mem-bound layer; keep activations in (C*V, N*T)
    # layout between layers to remove them entirely.
    M = N * T
    Mp = _round_up(M, 128)             # pad only to the lane quantum (no TM overshoot)
    X2 = jnp.transpose(x, (1, 3, 0, 2)).reshape(CV, M)
    X2 = jnp.pad(X2, ((0, CVp - CV), (0, Mp - M)))
    X2 = X2.at[CV, :].set(1.0)         # ones row matching the bias column of A_f
    X2 = X2.astype(jnp.bfloat16)

    # ---- generation-aware tile sizing (v7x: 64 MiB/TC; v5e/v6e: 128 MiB) ----
    vmem_cap = _vmem_capacity_bytes()
    tile_budget = vmem_cap // 4                  # headroom for scratch / compiler / 2nd core
    bytes_per_col = 2 * 2 * CVp + 2 * 4 * CWp    # double-buffered bf16 X + f32 O, per lane col
    a_bytes = 2 * CWp * CVp                      # resident bf16 fused weight (1 copy)
    tm_vmem = max(128, (tile_budget - a_bytes) // bytes_per_col // 128 * 128)
    if tm is None:
        tm = min(tm_vmem, tm_cap)
    TM = max(128, min(_round_up(tm, 128), Mp))
    # Prefer >= 4 pipelined grid steps (both v7x TCs + double buffering) while TM >= 512.
    if Mp >= 4 * 512:
        TM = min(TM, max(512, _round_up(pl.cdiv(Mp, 4), 128)))
    grid_m = pl.cdiv(Mp, TM)                     # ragged last block handled by Pallas
    vmem_limit = int(vmem_cap // 2)

    def _build(single_buffer_weight: bool):
        a_kwargs = {}
        if single_buffer_weight:
            # Constant block index -> only one VMEM copy of the fused weight is needed.
            a_kwargs["pipeline_mode"] = pl.Buffered(1)
        return pl.pallas_call(
            _spatial_conv_kernel,
            out_shape=jax.ShapeDtypeStruct((CWp, Mp), jnp.float32),
            grid_spec=pltpu.PrefetchScalarGridSpec(
                num_scalar_prefetch=0,
                grid=(grid_m,),
                in_specs=[
                    pl.BlockSpec((CWp, CVp), lambda i: (0, 0), **a_kwargs),  # fused weight
                    pl.BlockSpec((CVp, TM), lambda i: (0, i)),               # input tile
                ],
                out_specs=pl.BlockSpec((CWp, TM), lambda i: (0, i)),         # lane-dense out
            ),
            compiler_params=pltpu.CompilerParams(
                dimension_semantics=("parallel",),
                vmem_limit_bytes=vmem_limit,
            ),
        )

    try:
        out2 = _build(True)(A_f, X2)
    except Exception:
        # pl.Buffered(1) not accepted by this jax build: fall back to default buffering.
        out2 = _build(False)(A_f, X2)

    out2 = out2[:CW, :M]
    # (C_out*W, N*T) -> (C_out, W, N, T) -> (N, C_out, T, W)
    return out2.reshape(C_out, W, N, T).transpose(2, 0, 3, 1)


if __name__ == "__main__":
    key = jax.random.PRNGKey(0)
    k_x, k_w, k_b, k_a = jax.random.split(key, 4)

    # Small shapes consistent with the module: spatial graph conv over V=16 vertices,
    # K=3 adjacency partitions; T chosen so M = N*T exercises a multi-step grid with a
    # ragged last block (M=2200 -> Mp=2304).
    N, C_in, C_out, K, T, V = 2, 4, 8, 3, 1100, 16
    W = V  # adjacency is (K, V, V): vertex count is preserved

    x = jax.random.normal(k_x, (N, C_in, T, V), dtype=jnp.float32)
    conv_weight = jax.random.normal(k_w, (K * C_out, C_in), dtype=jnp.float32) * 0.1
    conv_bias = jax.random.normal(k_b, (K * C_out,), dtype=jnp.float32) * 0.1
    adj = jax.random.normal(k_a, (K, V, W), dtype=jnp.float32) * 0.25

    out = spatial_conv(x, conv_weight, conv_bias, adj, kernel_size=K)
    out = jax.block_until_ready(out)

    # Reference: the module's two-step forward (1x1 conv, then graph einsum), in f32.
    y = jnp.einsum("qc,nctv->nqtv", conv_weight, x) + conv_bias[None, :, None, None]
    y = y.reshape(N, K, C_out, T, V)
    ref = jnp.einsum("nkctv,kvw->nctw", y, adj)

    # bf16 MXU operands with f32 accumulate -> loosened tolerance vs the f32 reference.
    np.testing.assert_allclose(np.asarray(out), np.asarray(ref), rtol=2e-2, atol=2e-2)
    assert out.shape == (N, C_out, T, W)
    print("KERNEL_OK")
</pallas_src>

<mosaic_0001>
module attributes {stable_mosaic.version = 11 : i64} {
  func.func @_spatial_conv_kernel(%arg0: i32, %arg1: memref<128x80xbf16, #tpu.memory_space<vmem>>, %arg2: memref<80x640xbf16, #tpu.memory_space<vmem>>, %arg3: memref<128x640xf32, #tpu.memory_space<vmem>>) attributes {dimension_semantics = [#tpu.dimension_semantics<parallel>], iteration_bounds = array<i64: 4>, scalar_prefetch = 0 : i64, scratch_operands = 0 : i64, tpu.core_type = #tpu.core_type<tc>, window_params = [{pipeline_mode = #tpu.pipeline_mode<synchronous>, transform_indices = @transform_0, window_bounds = array<i64: 128, 80>}, {transform_indices = @transform_1, window_bounds = array<i64: 80, 640>}, {transform_indices = @transform_2, window_bounds = array<i64: 128, 640>}]} {
    %c0 = arith.constant 0 : index
    %c0_0 = arith.constant 0 : index
    %0 = vector.load %arg1[%c0, %c0_0] : memref<128x80xbf16, #tpu.memory_space<vmem>>, vector<128x80xbf16>
    %c0_1 = arith.constant 0 : index
    %c0_2 = arith.constant 0 : index
    %1 = vector.load %arg2[%c0_1, %c0_2] : memref<80x640xbf16, #tpu.memory_space<vmem>>, vector<80x640xbf16>
    %cst = arith.constant dense<0.000000e+00> : vector<128x640xf32>
    %2 = tpu.matmul %0, %1, %cst {dimension_numbers = #tpu.dot_dimension_numbers<[1], [0], [0], [1], [0, 0, 1, 1], [], []>} : vector<128x80xbf16>, vector<80x640xbf16>, vector<128x640xf32> -> vector<128x640xf32>
    %c0_3 = arith.constant 0 : index
    %c0_4 = arith.constant 0 : index
    %3 = vector.load %arg3[%c0_3, %c0_4] : memref<128x640xf32, #tpu.memory_space<vmem>>, vector<128x640xf32>
    tpu.vector_store %arg3[%c0_3, %c0_4], %2 {strides = array<i32>} : memref<128x640xf32, #tpu.memory_space<vmem>>, vector<128x640xf32>,
    return
  }
  func.func @transform_0(%arg0: i32) -> (i32, i32) {
    %c0_i32 = arith.constant 0 : i32
    %c0_i32_0 = arith.constant 0 : i32
    %c0_i32_1 = arith.constant 0 : i32
    return %c0_i32, %c0_i32_0 : i32, i32
  }
  func.func @transform_1(%arg0: i32) -> (i32, i32) {
    %c0_i32 = arith.constant 0 : i32
    %c0_i32_0 = arith.constant 0 : i32
    return %c0_i32, %arg0 : i32, i32
  }
  func.func @transform_2(%arg0: i32) -> (i32, i32) {
    %c0_i32 = arith.constant 0 : i32
    %c0_i32_0 = arith.constant 0 : i32
    return %c0_i32, %arg0 : i32, i32
  }
}

module attributes {stable_mosaic.version = 11 : i64} {
  func.func @_spatial_conv_kernel(%arg0: i32, %arg1: memref<128x80xbf16, #tpu.memory_space<vmem>>, %arg2: memref<80x640xbf16, #tpu.memory_space<vmem>>, %arg3: memref<128x640xf32, #tpu.memory_space<vmem>>) attributes {dimension_semantics = [#tpu.dimension_semantics<parallel>], iteration_bounds = array<i64: 4>, scalar_prefetch = 0 : i64, scratch_operands = 0 : i64, tpu.core_type = #tpu.core_type<tc>, window_params = [{pipeline_mode = #tpu.pipeline_mode<synchronous>, transform_indices = @transform_0, window_bounds = array<i64: 128, 80>}, {transform_indices = @transform_1, window_bounds = array<i64: 80, 640>}, {transform_indices = @transform_2, window_bounds = array<i64: 128, 640>}]} {
    %c0 = arith.constant 0 : index
    %c0_0 = arith.constant 0 : index
    %0 = vector.load %arg1[%c0, %c0_0] : memref<128x80xbf16, #tpu.memory_space<vmem>>, vector<128x80xbf16>
    %c0_1 = arith.constant 0 : index
    %c0_2 = arith.constant 0 : index
    %1 = vector.load %arg2[%c0_1, %c0_2] : memref<80x640xbf16, #tpu.memory_space<vmem>>, vector<80x640xbf16>
    %cst = arith.constant dense<0.000000e+00> : vector<128x640xf32>
    %2 = tpu.matmul %0, %1, %cst {dimension_numbers = #tpu.dot_dimension_numbers<[1], [0], [0], [1], [0, 0, 1, 1], [], []>} : vector<128x80xbf16>, vector<80x640xbf16>, vector<128x640xf32> -> vector<128x640xf32>
    %c0_3 = arith.constant 0 : index
    %c0_4 = arith.constant 0 : index
    %3 = vector.load %arg3[%c0_3, %c0_4] : memref<128x640xf32, #tpu.memory_space<vmem>>, vector<128x640xf32>
    tpu.vector_store %arg3[%c0_3, %c0_4], %2 {strides = array<i32>} : memref<128x640xf32, #tpu.memory_space<vmem>>, vector<128x640xf32>,
    return
  }
  func.func @transform_0(%arg0: i32) -> (i32, i32) {
    %c0_i32 = arith.constant 0 : i32
    %c0_i32_0 = arith.constant 0 : i32
    %c0_i32_1 = arith.constant 0 : i32
    return %c0_i32, %c0_i32_0 : i32, i32
  }
  func.func @transform_1(%arg0: i32) -> (i32, i32) {
    %c0_i32 = arith.constant 0 : i32
    %c0_i32_0 = arith.constant 0 : i32
    return %c0_i32, %arg0 : i32, i32
  }
  func.func @transform_2(%arg0: i32) -> (i32, i32) {
    %c0_i32 = arith.constant 0 : i32
    %c0_i32_0 = arith.constant 0 : i32
    return %c0_i32, %arg0 : i32, i32
  }
}

</mosaic_0001>

<llo_original>
// kernel: tpu_custom_call.1
$region0: #{tpu_custom_call.1}
  #allocation0 [shape = 'u32[]', space=smem, size = 0x4, offset = 0x4, fixed_abs, tag = 'smem constant byte address 0x4 - core index']
  #allocation1 [shape = 'u32[144,128]{1,0:T(1,128)}', space=vmem, size = 0x12000, scoped, tag = 'internal scratch']
  %s0 = inlined_call_operand.vmem [shape: bf16[128,80], index: 0, kind: input, shape index: {}]
  %s1 = inlined_call_operand.hbm [shape: bf16[80,2304], index: 1, kind: input, shape index: {}]
  %s2 = inlined_call_operand.hbm [shape: f32[128,2304], index: 2, kind: output, shape index: {}]
  %s3 = sld [smem:[#allocation0]]
  $region45: #{tpu_custom_call.1} parent=0
    _
  %s5 = ssub.s32 1, %s3
  %s6 = scalar_select 0, %s5, %s3
  $region1: #{tpu_custom_call.1} parent=0
    #allocation2 [shape = 'u8[204800]{0}', space=vmem, size = 0x32000, scoped, tag = 'input window, operand 1']
    #allocation3 [shape = 's32[2]{0}', space=sflag, size = 0x8, scoped, tag = 'scoped memory for tpu_custom_call.1']
    #allocation4 [shape = 's32[2]{0}', space=sflag, size = 0x8, scoped, tag = 'scoped memory for tpu_custom_call.1']
    #allocation5 [shape = 'u8[655360]{0}', space=vmem, size = 0xa0000, scoped, tag = 'output window, operand 0']
    %7 = vsyncpa [#allocation3], 0
    %s8 = scalar_lea.sflag [#allocation3], 1
    %9 = vsyncpa %s8, 0
    %10 = vsyncpa [#allocation4], 0
    %s11 = scalar_lea.sflag [#allocation4], 1
    %12 = vsyncpa %s11, 0
    loop: start=0, step=1, limit=6
    $region2: #{tpu_custom_call.1} parent=1 // loop_pre_header
      _
    $region3: #{tpu_custom_call.1} parent=1 // loop_header
      %s14 = sphi 0, %s18
      %p15 = scmp.ge.s32.totalorder %s14, 6
      %s22 = sphi 0, %s22
      %s24 = sphi 0, %s22
      %s25 = sphi 0, %s24
      %s39 = sphi 0, %s25
      %s45 = sphi 0, %s47
      %s48 = sphi 0, %s45
      %s49 = sphi 0, %s48
      %s65 = sphi 0, %s49
      %s71 = sphi 0, %s73
      %s74 = sphi 0, %s71
      %s75 = sphi 0, %s74
      %s91 = sphi 0, %s75
    $region4: #{tpu_custom_call.1} parent=1 // loop_header_branch
      %17 = sbr.rel (%p15) target = $region8
    $region5: #{tpu_custom_call.1} parent=1 // loop_body
      %s19 = ssub.s32 %s14, 1
      %s20 = ssub.s32 %s14, 2
      %s21 = sadd.s32 %s14, 1
      %s23 = sadd.s32 %s22, 1
      %p26 = scmp.eq.s32.totalorder %s14, 3
      %p27 = scmp.ne.s32.totalorder %s22, %s24
      %p28 = scmp.eq.s32.totalorder %s14, 0
      %p29 = por %p27, %p28
      %p30 = scmp.ne.s32.totalorder %s22, %s24
      %p31 = scmp.eq.s32.totalorder %s19, 3
      %p32 = por %p30, %p31
      %p33 = scmp.ne.s32.totalorder %s24, %s25
      %p34 = scmp.eq.s32.totalorder %s19, 0
      %p35 = por %p33, %p34
      %p36 = scmp.ne.s32.totalorder %s24, %s25
      %p37 = scmp.eq.s32.totalorder %s20, 3
      %p38 = por %p36, %p37
      %p40 = scmp.ne.s32.totalorder %s25, %s39
      %p41 = scmp.eq.s32.totalorder %s20, 0
      %p42 = por %p40, %p41
      %s43 = ssub.s32 %s14, %s21
      %p44 = scmp.eq.s32.totalorder %s43, 0
      %s46 = sadd.s32 %s45, 1
      %s47 = scalar_select %p44, %s45, %s46
      %p50 = pneg %p44
      %p51 = scmp.eq.s32.totalorder %s14, 3
      %p52 = por %p50, %p51
      %p53 = scmp.ne.s32.totalorder %s45, %s48
      %p54 = scmp.eq.s32.totalorder %s14, 0
      %p55 = por %p53, %p54
      %p56 = scmp.ne.s32.totalorder %s45, %s48
      %p57 = scmp.eq.s32.totalorder %s19, 3
      %p58 = por %p56, %p57
      %p59 = scmp.ne.s32.totalorder %s48, %s49
      %p60 = scmp.eq.s32.totalorder %s19, 0
      %p61 = por %p59, %p60
      %p62 = scmp.ne.s32.totalorder %s48, %s49
      %p63 = scmp.eq.s32.totalorder %s20, 3
      %p64 = por %p62, %p63
      %p66 = scmp.ne.s32.totalorder %s49, %s65
      %p67 = scmp.eq.s32.totalorder %s20, 0
      %p68 = por %p66, %p67
      %s69 = ssub.s32 %s14, %s21
      %p70 = scmp.eq.s32.totalorder %s69, 0
      %s72 = sadd.s32 %s71, 1
      %s73 = scalar_select %p70, %s71, %s72
      %p76 = pneg %p70
      %p77 = scmp.eq.s32.totalorder %s14, 3
      %p78 = por %p76, %p77
      %p79 = scmp.ne.s32.totalorder %s71, %s74
      %p80 = scmp.eq.s32.totalorder %s14, 0
      %p81 = por %p79, %p80
      %p82 = scmp.ne.s32.totalorder %s71, %s74
      %p83 = scmp.eq.s32.totalorder %s19, 3
      %p84 = por %p82, %p83
      %p85 = scmp.ne.s32.totalorder %s74, %s75
      %p86 = scmp.eq.s32.totalorder %s19, 0
      %p87 = por %p85, %p86
      %p88 = scmp.ne.s32.totalorder %s74, %s75
      %p89 = scmp.eq.s32.totalorder %s20, 3
      %p90 = por %p88, %p89
      %p92 = scmp.ne.s32.totalorder %s75, %s91
      %p93 = scmp.eq.s32.totalorder %s20, 0
      %p94 = por %p92, %p93
      %p95 = scmp.le.s32.totalorder 1, %s14
      %p96 = scmp.lt.s32.totalorder %s14, 5
      %p97 = pnand %p95, %p96
      %p98 = pneg %p97
      // Predicated region
      $region9: #{tpu_custom_call.1} parent=5 // pred_check
        _
      $region10: #{tpu_custom_call.1} parent=5 // pred_check_branch
        %100 = sbr.rel (%p97) target = $region12
      $region11: #{tpu_custom_call.1} parent=5 // pred_region
        %s101 = ssub.s32 %s14, 1
        // Predicated region
        $region13: #{tpu_custom_call.1} parent=11 // pred_check
          %p102 = pneg %p35
        $region14: #{tpu_custom_call.1} parent=11 // pred_check_branch
          %104 = sbr.rel (%p102) target = $region16
        $region15: #{tpu_custom_call.1} parent=11 // pred_region
          _
        $region16: #{tpu_custom_call.1} parent=11 // pred_fallthru
          _
      $region12: #{tpu_custom_call.1} parent=5 // pred_fallthru
        _
      %p105 = scmp.lt.s32.totalorder %s14, 4
      // Predicated region
      $region17: #{tpu_custom_call.1} parent=5 // pred_check
        %p106 = pneg %p105
      $region18: #{tpu_custom_call.1} parent=5 // pred_check_branch
        %108 = sbr.rel (%p106) target = $region20
      $region19: #{tpu_custom_call.1} parent=5 // pred_region
        // Predicated region
        $region21: #{tpu_custom_call.1} parent=19 // pred_check
          %p109 = pneg %p55
        $region22: #{tpu_custom_call.1} parent=19 // pred_check_branch
          %111 = sbr.rel (%p109) target = $region24
        $region23: #{tpu_custom_call.1} parent=19 // pred_region
          %s112 = sand.u32 %s45, 1
          %s113 = scalar_lea.sflag [#allocation3], %s112
          %s114 = sand.u32 %s45, 1
          %s115 = smul.addr %s114, 200
          %s116 = scalar_lea.vmem [#allocation2], %s115
          %s117 = smul.u32 5, %s14
          %s118 = ssub.s32 18, %s117
          %p119 = scmp.lt.s32.totalorder %s118, 5
          %s120 = scalar_select %p119, %s118, 5
          %s121 = smul.u32 640, %s120
          %s123 = ssub.s32 3200, %s121
          %124 = vsyncadd %s113, %s123
          %p125 = scmp.ne.s32.totalorder 0, %s121
          %s126 = smul.addr %s117, 64
          %s127 = scalar_lea.hbm %s1, %s126
          %s128 = smul.u32 %s120, 4
          %s129 = smul.u32 %s128, 10
          %s130 = sshll.u32 %s116, 4
          %s131 = int_to_ptr.vmem [resolvable:$true] %s130
          %s132 = sshll.u32 %s129, 4
          %136 = dma.hbm_to_vmem [thread:$0]  (%p125), %s127, %s132, %s131, %s113, 1152, 320, %s128
        $region24: #{tpu_custom_call.1} parent=19 // pred_fallthru
          _
      $region20: #{tpu_custom_call.1} parent=5 // pred_fallthru
        _
      %p137 = scmp.le.s32.totalorder 1, %s14
      %p138 = scmp.lt.s32.totalorder %s14, 5
      %p139 = pnand %p137, %p138
      %p140 = pneg %p139
      // Predicated region
      $region25: #{tpu_custom_call.1} parent=5 // pred_check
        _
      $region26: #{tpu_custom_call.1} parent=5 // pred_check_branch
        %142 = sbr.rel (%p139) target = $region28
      $region27: #{tpu_custom_call.1} parent=5 // pred_region
        %s143 = ssub.s32 %s14, 1
        %s144 = sand.u32 %s48, 1
        %s145 = scalar_lea.sflag [#allocation3], %s144
        %s146 = sand.u32 %s48, 1
        %s147 = smul.addr %s146, 200
        %s148 = scalar_lea.vmem [#allocation2], %s147
        // Predicated region
        $region29: #{tpu_custom_call.1} parent=27 // pred_check
          %p149 = pneg %p61
        $region30: #{tpu_custom_call.1} parent=27 // pred_check_branch
          %151 = sbr.rel (%p149) target = $region32
        $region31: #{tpu_custom_call.1} parent=27 // pred_region
          %152 = dma.done %s145, 3200
        $region32: #{tpu_custom_call.1} parent=27 // pred_fallthru
          _
        %p153 = pneg %p35
        %p154 = pneg %p32
        %s155 = sand.u32 %s48, 1
        %s156 = scalar_lea.sflag [#allocation3], %s155
        %s157 = sand.u32 %s48, 1
        %s158 = smul.addr %s157, 200
        %s159 = scalar_lea.vmem [#allocation2], %s158
        %p160 = pneg %p61
        %p161 = pneg %p58
        %p162 = pneg %p87
        %p163 = pneg %p84
        %s164 = sand.u32 %s74, 1
        %s165 = scalar_lea.sflag [#allocation4], %s164
        %s166 = sand.u32 %s74, 1
        %s167 = smul.addr %s166, 640
        %s168 = scalar_lea.vmem [#allocation5], %s167
        %s169 = smul.u32 5, %s19
        %s170 = ssub.s32 18, %s169
        %p171 = scmp.lt.s32.totalorder %s170, 5
        %s172 = scalar_select %p171, %s170, 5
        %s173 = smul.u32 640, %s172
        %s174 = smul.u32 5, %s19
        %s175 = ssub.s32 18, %s174
        %p176 = scmp.lt.s32.totalorder %s175, 5
        %s177 = scalar_select %p176, %s175, 5
        %s178 = smul.u32 2048, %s177
        %v180 = vld [vmem:[%s0] sm:$0xf]
        %v181 = vld [vmem:[%s0 + $0x4] sm:$0xf]
        %v182 = vld [vmem:[%s0 + $0x8] sm:$0xf]
        %v183 = vld [vmem:[%s0 + $0xc] sm:$0xf]
        %v184 = vld [vmem:[%s0 + $0x10] sm:$0xf]
        %v185 = vld [vmem:[%s0 + $0x14] sm:$0xf]
        %v186 = vld [vmem:[%s0 + $0x18] sm:$0xf]
        %v187 = vld [vmem:[%s0 + $0x1c] sm:$0xf]
        %v188 = vld [vmem:[%s0 + $0x20] sm:$0xf]
        %v189 = vld [vmem:[%s0 + $0x24] sm:$0xf]
        %v190 = vld [vmem:[%s0 + $0x28] sm:$0xf]
        %v191 = vld [vmem:[%s0 + $0x2c] sm:$0xf]
        %v192 = vld [vmem:[%s0 + $0x30] sm:$0xf]
        %v193 = vld [vmem:[%s0 + $0x34] sm:$0xf]
        %v194 = vld [vmem:[%s0 + $0x38] sm:$0xf]
        %v195 = vld [vmem:[%s0 + $0x3c] sm:$0xf]
        %v196 = vld [vmem:[%s148] sm:$0xff]
        %v197 = vld [vmem:[%s148 + $0x8] sm:$0xff]
        %v198 = vld [vmem:[%s148 + $0x10] sm:$0xf]
        %v199 = vld [vmem:[%s148 + $0x14] sm:$0xff]
        %v200 = vld [vmem:[%s148 + $0x1c] sm:$0xff]
        %v201 = vld [vmem:[%s148 + $0x24] sm:$0xf]
        %v202 = vld [vmem:[%s148 + $0x28] sm:$0xff]
        %v203 = vld [vmem:[%s148 + $0x30] sm:$0xff]
        %v204 = vld [vmem:[%s148 + $0x38] sm:$0xf]
        %v205 = vld [vmem:[%s148 + $0x3c] sm:$0xff]
        %v206 = vld [vmem:[%s148 + $0x44] sm:$0xff]
        %v207 = vld [vmem:[%s148 + $0x4c] sm:$0xf]
        %v208 = vld [vmem:[%s148 + $0x50] sm:$0xff]
        %v209 = vld [vmem:[%s148 + $0x58] sm:$0xff]
        %v210 = vld [vmem:[%s148 + $0x60] sm:$0xf]
        %v211 = vld [vmem:[%s148 + $0x64] sm:$0xff]
        %v212 = vld [vmem:[%s148 + $0x6c] sm:$0xff]
        %v213 = vld [vmem:[%s148 + $0x74] sm:$0xf]
        %v214 = vld [vmem:[%s148 + $0x78] sm:$0xff]
        %v215 = vld [vmem:[%s148 + $0x80] sm:$0xff]
        %v216 = vld [vmem:[%s148 + $0x88] sm:$0xf]
        %v217 = vld [vmem:[%s148 + $0x8c] sm:$0xff]
        %v218 = vld [vmem:[%s148 + $0x94] sm:$0xff]
        %v219 = vld [vmem:[%s148 + $0x9c] sm:$0xf]
        %v220 = vld [vmem:[%s148 + $0xa0] sm:$0xff]
        %v221 = vld [vmem:[%s148 + $0xa8] sm:$0xff]
        %v222 = vld [vmem:[%s148 + $0xb0] sm:$0xf]
        %v223 = vld [vmem:[%s148 + $0xb4] sm:$0xff]
        %v224 = vld [vmem:[%s148 + $0xbc] sm:$0xff]
        %v225 = vld [vmem:[%s148 + $0xc4] sm:$0xf]
        %v242 = vunpack.c.l.b16 %v180
        %v243 = vunpack.c.l.b16 %v181
        %v244 = vunpack.c.l.b16 %v182
        %v245 = vunpack.c.l.b16 %v183
        %v246 = vunpack.c.l.b16 %v184
        %v247 = vunpack.c.l.b16 %v185
        %v248 = vunpack.c.l.b16 %v186
        %v249 = vunpack.c.l.b16 %v187
        %v250 = vunpack.c.l.b16 %v188
        %v251 = vunpack.c.l.b16 %v189
        %v252 = vunpack.c.l.b16 %v190
        %v253 = vunpack.c.l.b16 %v191
        %v254 = vunpack.c.l.b16 %v192
        %v255 = vunpack.c.l.b16 %v193
        %v256 = vunpack.c.l.b16 %v194
        %v257 = vunpack.c.l.b16 %v195
        %v258 = vpack.c.b16 %v243, %v242
        %v259 = vpack.c.b16 %v245, %v244
        %v260 = vpack.c.b16 %v247, %v246
        %v261 = vpack.c.b16 %v249, %v248
        %v262 = vpack.c.b16 %v251, %v250
        %v263 = vpack.c.b16 %v253, %v252
        %v264 = vpack.c.b16 %v255, %v254
        %v265 = vpack.c.b16 %v257, %v256
        %v296 = vunpack.c.l.b16 %v196
        %v297 = vunpack.c.h.b16 %v196
        %v298 = vunpack.c.l.b16 %v197
        %v299 = vunpack.c.h.b16 %v197
        %v300 = vunpack.c.l.b16 %v198
        %v301 = vunpack.c.l.b16 %v199
        %v302 = vunpack.c.h.b16 %v199
        %v303 = vunpack.c.l.b16 %v200
        %v304 = vunpack.c.h.b16 %v200
        %v305 = vunpack.c.l.b16 %v201
        %v306 = vunpack.c.l.b16 %v202
        %v307 = vunpack.c.h.b16 %v202
        %v308 = vunpack.c.l.b16 %v203
        %v309 = vunpack.c.h.b16 %v203
        %v310 = vunpack.c.l.b16 %v204
        %v311 = vunpack.c.l.b16 %v205
        %v312 = vunpack.c.h.b16 %v205
        %v313 = vunpack.c.l.b16 %v206
        %v314 = vunpack.c.h.b16 %v206
        %v315 = vunpack.c.l.b16 %v207
        %v316 = vunpack.c.l.b16 %v208
        %v317 = vunpack.c.h.b16 %v208
        %v318 = vunpack.c.l.b16 %v209
        %v319 = vunpack.c.h.b16 %v209
        %v320 = vunpack.c.l.b16 %v210
        %v321 = vunpack.c.l.b16 %v211
        %v322 = vunpack.c.h.b16 %v211
        %v323 = vunpack.c.l.b16 %v212
        %v324 = vunpack.c.h.b16 %v212
        %v325 = vunpack.c.l.b16 %v213
        %v326 = vunpack.c.l.b16 %v214
        %v327 = vunpack.c.h.b16 %v214
        %v328 = vunpack.c.l.b16 %v215
        %v329 = vunpack.c.h.b16 %v215
        %v330 = vunpack.c.l.b16 %v216
        %v331 = vunpack.c.l.b16 %v217
        %v332 = vunpack.c.h.b16 %v217
        %v333 = vunpack.c.l.b16 %v218
        %v334 = vunpack.c.h.b16 %v218
        %v335 = vunpack.c.l.b16 %v219
        %v336 = vunpack.c.l.b16 %v220
        %v337 = vunpack.c.h.b16 %v220
        %v338 = vunpack.c.l.b16 %v221
        %v339 = vunpack.c.h.b16 %v221
        %v340 = vunpack.c.l.b16 %v222
        %v341 = vunpack.c.l.b16 %v223
        %v342 = vunpack.c.h.b16 %v223
        %v343 = vunpack.c.l.b16 %v224
        %v344 = vunpack.c.h.b16 %v224
        %v345 = vunpack.c.l.b16 %v225
        %v346 = vpack.c.b16 %v301, %v296
        %v347 = vpack.c.b16 %v302, %v297
        %v348 = vpack.c.b16 %v303, %v298
        %v349 = vpack.c.b16 %v304, %v299
        %v350 = vpack.c.b16 %v305, %v300
        %v351 = vpack.c.b16 %v311, %v306
        %v352 = vpack.c.b16 %v312, %v307
        %v353 = vpack.c.b16 %v313, %v308
        %v354 = vpack.c.b16 %v314, %v309
        %v355 = vpack.c.b16 %v315, %v310
        %v356 = vpack.c.b16 %v321, %v316
        %v357 = vpack.c.b16 %v322, %v317
        %v358 = vpack.c.b16 %v323, %v318
        %v359 = vpack.c.b16 %v324, %v319
        %v360 = vpack.c.b16 %v325, %v320
        %v361 = vpack.c.b16 %v331, %v326
        %v362 = vpack.c.b16 %v332, %v327
        %v363 = vpack.c.b16 %v333, %v328
        %v364 = vpack.c.b16 %v334, %v329
        %v365 = vpack.c.b16 %v335, %v330
        %v366 = vpack.c.b16 %v341, %v336
        %v367 = vpack.c.b16 %v342, %v337
        %v368 = vpack.c.b16 %v343, %v338
        %v369 = vpack.c.b16 %v344, %v339
        %v370 = vpack.c.b16 %v345, %v340
        %vm396 = vcmask 654336
        %v398 = vsel %vm396, %v258, 0
        %v401 = vsel %vm396, %v259, 0
        %v404 = vsel %vm396, %v260, 0
        %v407 = vsel %vm396, %v261, 0
        %v410 = vsel %vm396, %v262, 0
        %v413 = vsel %vm396, %v263, 0
        %v416 = vsel %vm396, %v264, 0
        %v419 = vsel %vm396, %v265, 0
        %421 = vmatprep.subr.bf16.mxu0 %v347
        %422 = vmatpush1.bf16.msra.mxu0 %v346
        %423 = vmatprep.subr.bf16.mxu0 %v352
        %424 = vmatpush1.bf16.msra.mxu0 %v351
        %425 = vmatprep.subr.bf16.mxu0 %v357
        %426 = vmatpush1.bf16.msra.mxu0 %v356
        %427 = vmatprep.subr.bf16.mxu0 %v362
        %428 = vmatpush1.bf16.msra.mxu0 %v361
        %429 = vmatprep.subr.bf16.mxu0 %v367
        %430 = vmatpush1.bf16.msra.mxu0 %v366
        %431 = vmatprep.subr.bf16.mxu0 0
        %432 = vmatpush1.bf16.msra.mxu0 0
        %433 = vmatprep.subr.bf16.mxu0 0
        %434 = vmatpush1.bf16.msra.mxu0 0
        %435 = vmatprep.subr.bf16.mxu0 0
        %436 = vmatpush1.bf16.msra.mxu0 0
        %437 = vmatprep.subr.bf16.mxu0 0
        %438 = vmatpush1.bf16.msra.mxu0 0
        %439 = vmatprep.subr.bf16.mxu0 0
        %440 = vmatpush1.bf16.msra.mxu0 0
        %441 = vmatprep.subr.bf16.mxu0 0
        %442 = vmatpush1.bf16.msra.mxu0 0
        %443 = vmatprep.subr.bf16.mxu0 0
        %444 = vmatpush1.bf16.msra.mxu0 0
        %445 = vmatprep.subr.bf16.mxu0 0
        %446 = vmatpush1.bf16.msra.mxu0 0
        %447 = vmatprep.subr.bf16.mxu0 0
        %448 = vmatpush1.bf16.msra.mxu0 0
        %449 = vmatprep.subr.bf16.mxu0 0
        %450 = vmatpush1.bf16.msra.mxu0 0
        %451 = vmatprep.subr.bf16.mxu0 0
        %452 = vmatpush1.bf16.msra.mxu0 0
        %453 = vmatprep.mubr.bf16.mxu0 0
        %454 = vmatmul.mubr.bf16.gmra.mrb[0].mxu0 %v398
        %v455 = vpop.f32.mrb[0].mxu0
        %v456 = vadd.f32 0.0, %v455
        %v457 = vpop.f32.mrb[0].mxu0
        %v458 = vadd.f32 0.0, %v457
        %v459 = vpop.f32.mrb[0].mxu0
        %v460 = vadd.f32 0.0, %v459
        %v461 = vpop.f32.mrb[0].mxu0
        %v462 = vadd.f32 0.0, %v461
        %463 = vmatprep.mubr.bf16.mxu0 0
        %464 = vmatmul.mubr.bf16.gmra.mrb[0].mxu0 %v401
        %v465 = vpop.f32.mrb[0].mxu0
        %v466 = vadd.f32 0.0, %v465
        %v467 = vpop.f32.mrb[0].mxu0
        %v468 = vadd.f32 0.0, %v467
        %v469 = vpop.f32.mrb[0].mxu0
        %v470 = vadd.f32 0.0, %v469
        %v471 = vpop.f32.mrb[0].mxu0
        %v472 = vadd.f32 0.0, %v471
        %473 = vmatprep.mubr.bf16.mxu0 0
        %474 = vmatmul.mubr.bf16.gmra.mrb[0].mxu0 %v404
        %v475 = vpop.f32.mrb[0].mxu0
        %v476 = vadd.f32 0.0, %v475
        %v477 = vpop.f32.mrb[0].mxu0
        %v478 = vadd.f32 0.0, %v477
        %v479 = vpop.f32.mrb[0].mxu0
        %v480 = vadd.f32 0.0, %v479
        %v481 = vpop.f32.mrb[0].mxu0
        %v482 = vadd.f32 0.0, %v481
        %483 = vmatprep.mubr.bf16.mxu0 0
        %484 = vmatmul.mubr.bf16.gmra.mrb[0].mxu0 %v407
        %v485 = vpop.f32.mrb[0].mxu0
        %v486 = vadd.f32 0.0, %v485
        %v487 = vpop.f32.mrb[0].mxu0
        %v488 = vadd.f32 0.0, %v487
        %v489 = vpop.f32.mrb[0].mxu0
        %v490 = vadd.f32 0.0, %v489
        %v491 = vpop.f32.mrb[0].mxu0
        %v492 = vadd.f32 0.0, %v491
        %493 = vmatprep.mubr.bf16.mxu0 0
        %494 = vmatmul.mubr.bf16.gmra.mrb[0].mxu0 %v410
        %v495 = vpop.f32.mrb[0].mxu0
        %v496 = vadd.f32 0.0, %v495
        %v497 = vpop.f32.mrb[0].mxu0
        %v498 = vadd.f32 0.0, %v497
        %v499 = vpop.f32.mrb[0].mxu0
        %v500 = vadd.f32 0.0, %v499
        %v501 = vpop.f32.mrb[0].mxu0
        %v502 = vadd.f32 0.0, %v501
        %503 = vmatprep.mubr.bf16.mxu0 0
        %504 = vmatmul.mubr.bf16.gmra.mrb[0].mxu0 %v413
        %v505 = vpop.f32.mrb[0].mxu0
        %v506 = vadd.f32 0.0, %v505
        %v507 = vpop.f32.mrb[0].mxu0
        %v508 = vadd.f32 0.0, %v507
        %v509 = vpop.f32.mrb[0].mxu0
        %v510 = vadd.f32 0.0, %v509
        %v511 = vpop.f32.mrb[0].mxu0
        %v512 = vadd.f32 0.0, %v511
        %513 = vmatprep.mubr.bf16.mxu0 0
        %514 = vmatmul.mubr.bf16.gmra.mrb[0].mxu0 %v416
        %v515 = vpop.f32.mrb[0].mxu0
        %v516 = vadd.f32 0.0, %v515
        %v517 = vpop.f32.mrb[0].mxu0
        %v518 = vadd.f32 0.0, %v517
        %v519 = vpop.f32.mrb[0].mxu0
        %v520 = vadd.f32 0.0, %v519
        %v521 = vpop.f32.mrb[0].mxu0
        %v522 = vadd.f32 0.0, %v521
        %523 = vmatprep.mubr.bf16.mxu0 0
        %524 = vmatmul.mubr.bf16.gmra.mrb[0].mxu0 %v419
        %v525 = vpop.f32.mrb[0].mxu0
        %v526 = vadd.f32 0.0, %v525
        %v527 = vpop.f32.mrb[0].mxu0
        %v528 = vadd.f32 0.0, %v527
        %v529 = vpop.f32.mrb[0].mxu0
        %v530 = vadd.f32 0.0, %v529
        %v531 = vpop.f32.mrb[0].mxu0
        %v532 = vadd.f32 0.0, %v531
        %533 = vdwg.mxu0
        %534 = vmatprep.subr.bf16.mxu0 %v349
        %535 = vmatpush1.bf16.msra.mxu0 %v348
        %536 = vmatprep.subr.bf16.mxu0 %v354
        %537 = vmatpush1.bf16.msra.mxu0 %v353
        %538 = vmatprep.subr.bf16.mxu0 %v359
        %539 = vmatpush1.bf16.msra.mxu0 %v358
        %540 = vmatprep.subr.bf16.mxu0 %v364
        %541 = vmatpush1.bf16.msra.mxu0 %v363
        %542 = vmatprep.subr.bf16.mxu0 %v369
        %543 = vmatpush1.bf16.msra.mxu0 %v368
        %544 = vmatprep.subr.bf16.mxu0 0
        %545 = vmatpush1.bf16.msra.mxu0 0
        %546 = vmatprep.subr.bf16.mxu0 0
        %547 = vmatpush1.bf16.msra.mxu0 0
        %548 = vmatprep.subr.bf16.mxu0 0
        %549 = vmatpush1.bf16.msra.mxu0 0
        %550 = vmatprep.subr.bf16.mxu0 0
        %551 = vmatpush1.bf16.msra.mxu0 0
        %552 = vmatprep.subr.bf16.mxu0 0
        %553 = vmatpush1.bf16.msra.mxu0 0
        %554 = vmatprep.subr.bf16.mxu0 0
        %555 = vmatpush1.bf16.msra.mxu0 0
        %556 = vmatprep.subr.bf16.mxu0 0
        %557 = vmatpush1.bf16.msra.mxu0 0
        %558 = vmatprep.subr.bf16.mxu0 0
        %559 = vmatpush1.bf16.msra.mxu0 0
        %560 = vmatprep.subr.bf16.mxu0 0
        %561 = vmatpush1.bf16.msra.mxu0 0
        %562 = vmatprep.subr.bf16.mxu0 0
        %563 = vmatpush1.bf16.msra.mxu0 0
        %564 = vmatprep.subr.bf16.mxu0 0
        %565 = vmatpush1.bf16.msra.mxu0 0
        %566 = vmatprep.mubr.bf16.mxu0 0
        %567 = vmatmul.mubr.bf16.gmra.mrb[0].mxu0 %v398
        %v568 = vpop.f32.mrb[0].mxu0
        %v569 = vadd.f32 0.0, %v568
        %v570 = vpop.f32.mrb[0].mxu0
        %v571 = vadd.f32 0.0, %v570
        %v572 = vpop.f32.mrb[0].mxu0
        %v573 = vadd.f32 0.0, %v572
        %v574 = vpop.f32.mrb[0].mxu0
        %v575 = vadd.f32 0.0, %v574
        %576 = vmatprep.mubr.bf16.mxu0 0
        %577 = vmatmul.mubr.bf16.gmra.mrb[0].mxu0 %v401
        %v578 = vpop.f32.mrb[0].mxu0
        %v579 = vadd.f32 0.0, %v578
        %v580 = vpop.f32.mrb[0].mxu0
        %v581 = vadd.f32 0.0, %v580
        %v582 = vpop.f32.mrb[0].mxu0
        %v583 = vadd.f32 0.0, %v582
        %v584 = vpop.f32.mrb[0].mxu0
        %v585 = vadd.f32 0.0, %v584
        %586 = vmatprep.mubr.bf16.mxu0 0
        %587 = vmatmul.mubr.bf16.gmra.mrb[0].mxu0 %v404
        %v588 = vpop.f32.mrb[0].mxu0
        %v589 = vadd.f32 0.0, %v588
        %v590 = vpop.f32.mrb[0].mxu0
        %v591 = vadd.f32 0.0, %v590
        %v592 = vpop.f32.mrb[0].mxu0
        %v593 = vadd.f32 0.0, %v592
        %v594 = vpop.f32.mrb[0].mxu0
        %v595 = vadd.f32 0.0, %v594
        %596 = vmatprep.mubr.bf16.mxu0 0
        %597 = vmatmul.mubr.bf16.gmra.mrb[0].mxu0 %v407
        %v598 = vpop.f32.mrb[0].mxu0
        %v599 = vadd.f32 0.0, %v598
        %v600 = vpop.f32.mrb[0].mxu0
        %v601 = vadd.f32 0.0, %v600
        %v602 = vpop.f32.mrb[0].mxu0
        %v603 = vadd.f32 0.0, %v602
        %v604 = vpop.f32.mrb[0].mxu0
        %v605 = vadd.f32 0.0, %v604
        %606 = vmatprep.mubr.bf16.mxu0 0
        %607 = vmatmul.mubr.bf16.gmra.mrb[0].mxu0 %v410
        %v608 = vpop.f32.mrb[0].mxu0
        %v609 = vadd.f32 0.0, %v608
        %v610 = vpop.f32.mrb[0].mxu0
        %v611 = vadd.f32 0.0, %v610
        %v612 = vpop.f32.mrb[0].mxu0
        %v613 = vadd.f32 0.0, %v612
        %v614 = vpop.f32.mrb[0].mxu0
        %v615 = vadd.f32 0.0, %v614
        %616 = vmatprep.mubr.bf16.mxu0 0
        %617 = vmatmul.mubr.bf16.gmra.mrb[0].mxu0 %v413
        %v618 = vpop.f32.mrb[0].mxu0
        %v619 = vadd.f32 0.0, %v618
        %v620 = vpop.f32.mrb[0].mxu0
        %v621 = vadd.f32 0.0, %v620
        %v622 = vpop.f32.mrb[0].mxu0
        %v623 = vadd.f32 0.0, %v622
        %v624 = vpop.f32.mrb[0].mxu0
        %v625 = vadd.f32 0.0, %v624
        %626 = vmatprep.mubr.bf16.mxu0 0
        %627 = vmatmul.mubr.bf16.gmra.mrb[0].mxu0 %v416
        %v628 = vpop.f32.mrb[0].mxu0
        %v629 = vadd.f32 0.0, %v628
        %v630 = vpop.f32.mrb[0].mxu0
        %v631 = vadd.f32 0.0, %v630
        %v632 = vpop.f32.mrb[0].mxu0
        %v633 = vadd.f32 0.0, %v632
        %v634 = vpop.f32.mrb[0].mxu0
        %v635 = vadd.f32 0.0, %v634
        %636 = vmatprep.mubr.bf16.mxu0 0
        %637 = vmatmul.mubr.bf16.gmra.mrb[0].mxu0 %v419
        %v638 = vpop.f32.mrb[0].mxu0
        %v639 = vadd.f32 0.0, %v638
        %v640 = vpop.f32.mrb[0].mxu0
        %v641 = vadd.f32 0.0, %v640
        %v642 = vpop.f32.mrb[0].mxu0
        %v643 = vadd.f32 0.0, %v642
        %v644 = vpop.f32.mrb[0].mxu0
        %v645 = vadd.f32 0.0, %v644
        %646 = vdwg.mxu0
        %647 = vmatprep.subr.bf16.mxu0 0
        %648 = vmatpush1.bf16.msra.mxu0 %v350
        %649 = vmatprep.subr.bf16.mxu0 0
        %650 = vmatpush1.bf16.msra.mxu0 %v355
        %651 = vmatprep.subr.bf16.mxu0 0
        %652 = vmatpush1.bf16.msra.mxu0 %v360
        %653 = vmatprep.subr.bf16.mxu0 0
        %654 = vmatpush1.bf16.msra.mxu0 %v365
        %655 = vmatprep.subr.bf16.mxu0 0
        %656 = vmatpush1.bf16.msra.mxu0 %v370
        %657 = vmatprep.subr.bf16.mxu0 0
        %658 = vmatpush1.bf16.msra.mxu0 0
        %659 = vmatprep.subr.bf16.mxu0 0
        %660 = vmatpush1.bf16.msra.mxu0 0
        %661 = vmatprep.subr.bf16.mxu0 0
        %662 = vmatpush1.bf16.msra.mxu0 0
        %663 = vmatprep.subr.bf16.mxu0 0
        %664 = vmatpush1.bf16.msra.mxu0 0
        %665 = vmatprep.subr.bf16.mxu0 0
        %666 = vmatpush1.bf16.msra.mxu0 0
        %667 = vmatprep.subr.bf16.mxu0 0
        %668 = vmatpush1.bf16.msra.mxu0 0
        %669 = vmatprep.subr.bf16.mxu0 0
        %670 = vmatpush1.bf16.msra.mxu0 0
        %671 = vmatprep.subr.bf16.mxu0 0
        %672 = vmatpush1.bf16.msra.mxu0 0
        %673 = vmatprep.subr.bf16.mxu0 0
        %674 = vmatpush1.bf16.msra.mxu0 0
        %675 = vmatprep.subr.bf16.mxu0 0
        %676 = vmatpush1.bf16.msra.mxu0 0
        %677 = vmatprep.subr.bf16.mxu0 0
        %678 = vmatpush1.bf16.msra.mxu0 0
        %679 = vmatprep.mubr.bf16.mxu0 0
        %680 = vmatmul.mubr.bf16.gmra.mrb[0].mxu0 %v398
        %v681 = vpop.f32.mrb[0].mxu0
        %v682 = vadd.f32 0.0, %v681
        %v683 = vpop.f32.mrb[0].mxu0
        %v684 = vpop.f32.mrb[0].mxu0
        %v685 = vadd.f32 0.0, %v684
        %v686 = vpop.f32.mrb[0].mxu0
        %687 = vmatprep.mubr.bf16.mxu0 0
        %688 = vmatmul.mubr.bf16.gmra.mrb[0].mxu0 %v401
        %v689 = vpop.f32.mrb[0].mxu0
        %v690 = vadd.f32 0.0, %v689
        %v691 = vpop.f32.mrb[0].mxu0
        %v692 = vpop.f32.mrb[0].mxu0
        %v693 = vadd.f32 0.0, %v692
        %v694 = vpop.f32.mrb[0].mxu0
        %695 = vmatprep.mubr.bf16.mxu0 0
        %696 = vmatmul.mubr.bf16.gmra.mrb[0].mxu0 %v404
        %v697 = vpop.f32.mrb[0].mxu0
        %v698 = vadd.f32 0.0, %v697
        %v699 = vpop.f32.mrb[0].mxu0
        %v700 = vpop.f32.mrb[0].mxu0
        %v701 = vadd.f32 0.0, %v700
        %v702 = vpop.f32.mrb[0].mxu0
        %703 = vmatprep.mubr.bf16.mxu0 0
        %704 = vmatmul.mubr.bf16.gmra.mrb[0].mxu0 %v407
        %v705 = vpop.f32.mrb[0].mxu0
        %v706 = vadd.f32 0.0, %v705
        %v707 = vpop.f32.mrb[0].mxu0
        %v708 = vpop.f32.mrb[0].mxu0
        %v709 = vadd.f32 0.0, %v708
        %v710 = vpop.f32.mrb[0].mxu0
        %711 = vmatprep.mubr.bf16.mxu0 0
        %712 = vmatmul.mubr.bf16.gmra.mrb[0].mxu0 %v410
        %v713 = vpop.f32.mrb[0].mxu0
        %v714 = vadd.f32 0.0, %v713
        %v715 = vpop.f32.mrb[0].mxu0
        %v716 = vpop.f32.mrb[0].mxu0
        %v717 = vadd.f32 0.0, %v716
        %v718 = vpop.f32.mrb[0].mxu0
        %719 = vmatprep.mubr.bf16.mxu0 0
        %720 = vmatmul.mubr.bf16.gmra.mrb[0].mxu0 %v413
        %v721 = vpop.f32.mrb[0].mxu0
        %v722 = vadd.f32 0.0, %v721
        %v723 = vpop.f32.mrb[0].mxu0
        %v724 = vpop.f32.mrb[0].mxu0
        %v725 = vadd.f32 0.0, %v724
        %v726 = vpop.f32.mrb[0].mxu0
        %727 = vmatprep.mubr.bf16.mxu0 0
        %728 = vmatmul.mubr.bf16.gmra.mrb[0].mxu0 %v416
        %v729 = vpop.f32.mrb[0].mxu0
        %v730 = vadd.f32 0.0, %v729
        %v731 = vpop.f32.mrb[0].mxu0
        %v732 = vpop.f32.mrb[0].mxu0
        %v733 = vadd.f32 0.0, %v732
        %v734 = vpop.f32.mrb[0].mxu0
        %735 = vmatprep.mubr.bf16.mxu0 0
        %736 = vmatmul.mubr.bf16.gmra.mrb[0].mxu0 %v419
        %v737 = vpop.f32.mrb[0].mxu0
        %v738 = vadd.f32 0.0, %v737
        %v739 = vpop.f32.mrb[0].mxu0
        %v740 = vpop.f32.mrb[0].mxu0
        %v741 = vadd.f32 0.0, %v740
        %v742 = vpop.f32.mrb[0].mxu0
        %743 = vdwg.mxu0
        %744 = vst [vmem:[%s168] sm:$0xff] %v456
        %745 = vst [vmem:[%s168 + $0x8] sm:$0xff] %v458
        %746 = vst [vmem:[%s168 + $0x10] sm:$0xff] %v569
        %747 = vst [vmem:[%s168 + $0x18] sm:$0xff] %v571
        %748 = vst [vmem:[%s168 + $0x20] sm:$0xff] %v682
        %749 = vst [vmem:[%s168 + $0x28] sm:$0xff] %v460
        %750 = vst [vmem:[%s168 + $0x30] sm:$0xff] %v462
        %751 = vst [vmem:[%s168 + $0x38] sm:$0xff] %v573
        %752 = vst [vmem:[%s168 + $0x40] sm:$0xff] %v575
        %753 = vst [vmem:[%s168 + $0x48] sm:$0xff] %v685
        %754 = vst [vmem:[%s168 + $0x50] sm:$0xff] %v466
        %755 = vst [vmem:[%s168 + $0x58] sm:$0xff] %v468
        %756 = vst [vmem:[%s168 + $0x60] sm:$0xff] %v579
        %757 = vst [vmem:[%s168 + $0x68] sm:$0xff] %v581
        %758 = vst [vmem:[%s168 + $0x70] sm:$0xff] %v690
        %759 = vst [vmem:[%s168 + $0x78] sm:$0xff] %v470
        %760 = vst [vmem:[%s168 + $0x80] sm:$0xff] %v472
        %761 = vst [vmem:[%s168 + $0x88] sm:$0xff] %v583
        %762 = vst [vmem:[%s168 + $0x90] sm:$0xff] %v585
        %763 = vst [vmem:[%s168 + $0x98] sm:$0xff] %v693
        %764 = vst [vmem:[%s168 + $0xa0] sm:$0xff] %v476
        %765 = vst [vmem:[%s168 + $0xa8] sm:$0xff] %v478
        %766 = vst [vmem:[%s168 + $0xb0] sm:$0xff] %v589
        %767 = vst [vmem:[%s168 + $0xb8] sm:$0xff] %v591
        %768 = vst [vmem:[%s168 + $0xc0] sm:$0xff] %v698
        %769 = vst [vmem:[%s168 + $0xc8] sm:$0xff] %v480
        %770 = vst [vmem:[%s168 + $0xd0] sm:$0xff] %v482
        %771 = vst [vmem:[%s168 + $0xd8] sm:$0xff] %v593
        %772 = vst [vmem:[%s168 + $0xe0] sm:$0xff] %v595
        %773 = vst [vmem:[%s168 + $0xe8] sm:$0xff] %v701
        %774 = vst [vmem:[%s168 + $0xf0] sm:$0xff] %v486
        %775 = vst [vmem:[%s168 + $0xf8] sm:$0xff] %v488
        %776 = vst [vmem:[%s168 + $0x100] sm:$0xff] %v599
        %777 = vst [vmem:[%s168 + $0x108] sm:$0xff] %v601
        %778 = vst [vmem:[%s168 + $0x110] sm:$0xff] %v706
        %779 = vst [vmem:[%s168 + $0x118] sm:$0xff] %v490
        %780 = vst [vmem:[%s168 + $0x120] sm:$0xff] %v492
        %781 = vst [vmem:[%s168 + $0x128] sm:$0xff] %v603
        %782 = vst [vmem:[%s168 + $0x130] sm:$0xff] %v605
        %783 = vst [vmem:[%s168 + $0x138] sm:$0xff] %v709
        %784 = vst [vmem:[%s168 + $0x140] sm:$0xff] %v496
        %785 = vst [vmem:[%s168 + $0x148] sm:$0xff] %v498
        %786 = vst [vmem:[%s168 + $0x150] sm:$0xff] %v609
        %787 = vst [vmem:[%s168 + $0x158] sm:$0xff] %v611
        %788 = vst [vmem:[%s168 + $0x160] sm:$0xff] %v714
        %789 = vst [vmem:[%s168 + $0x168] sm:$0xff] %v500
        %790 = vst [vmem:[%s168 + $0x170] sm:$0xff] %v502
        %791 = vst [vmem:[%s168 + $0x178] sm:$0xff] %v613
        %792 = vst [vmem:[%s168 + $0x180] sm:$0xff] %v615
        %793 = vst [vmem:[%s168 + $0x188] sm:$0xff] %v717
        %794 = vst [vmem:[%s168 + $0x190] sm:$0xff] %v506
        %795 = vst [vmem:[%s168 + $0x198] sm:$0xff] %v508
        %796 = vst [vmem:[%s168 + $0x1a0] sm:$0xff] %v619
        %797 = vst [vmem:[%s168 + $0x1a8] sm:$0xff] %v621
        %798 = vst [vmem:[%s168 + $0x1b0] sm:$0xff] %v722
        %799 = vst [vmem:[%s168 + $0x1b8] sm:$0xff] %v510
        %800 = vst [vmem:[%s168 + $0x1c0] sm:$0xff] %v512
        %801 = vst [vmem:[%s168 + $0x1c8] sm:$0xff] %v623
        %802 = vst [vmem:[%s168 + $0x1d0] sm:$0xff] %v625
        %803 = vst [vmem:[%s168 + $0x1d8] sm:$0xff] %v725
        %804 = vst [vmem:[%s168 + $0x1e0] sm:$0xff] %v516
        %805 = vst [vmem:[%s168 + $0x1e8] sm:$0xff] %v518
        %806 = vst [vmem:[%s168 + $0x1f0] sm:$0xff] %v629
        %807 = vst [vmem:[%s168 + $0x1f8] sm:$0xff] %v631
        %808 = vst [vmem:[%s168 + $0x200] sm:$0xff] %v730
        %809 = vst [vmem:[%s168 + $0x208] sm:$0xff] %v520
        %810 = vst [vmem:[%s168 + $0x210] sm:$0xff] %v522
        %811 = vst [vmem:[%s168 + $0x218] sm:$0xff] %v633
        %812 = vst [vmem:[%s168 + $0x220] sm:$0xff] %v635
        %813 = vst [vmem:[%s168 + $0x228] sm:$0xff] %v733
        %814 = vst [vmem:[%s168 + $0x230] sm:$0xff] %v526
        %815 = vst [vmem:[%s168 + $0x238] sm:$0xff] %v528
        %816 = vst [vmem:[%s168 + $0x240] sm:$0xff] %v639
        %817 = vst [vmem:[%s168 + $0x248] sm:$0xff] %v641
        %818 = vst [vmem:[%s168 + $0x250] sm:$0xff] %v738
        %819 = vst [vmem:[%s168 + $0x258] sm:$0xff] %v530
        %820 = vst [vmem:[%s168 + $0x260] sm:$0xff] %v532
        %821 = vst [vmem:[%s168 + $0x268] sm:$0xff] %v643
        %822 = vst [vmem:[%s168 + $0x270] sm:$0xff] %v645
        %823 = vst [vmem:[%s168 + $0x278] sm:$0xff] %v741
        %s824 = sand.u32 %s74, 1
        %s825 = scalar_lea.sflag [#allocation4], %s824
        %s826 = sand.u32 %s74, 1
        %s827 = smul.addr %s826, 640
        %s828 = scalar_lea.vmem [#allocation5], %s827
        // Predicated region
        $region33: #{tpu_custom_call.1} parent=27 // pred_check
          %p829 = pneg %p84
        $region34: #{tpu_custom_call.1} parent=27 // pred_check_branch
          %831 = sbr.rel (%p829) target = $region36
        $region35: #{tpu_custom_call.1} parent=27 // pred_region
          %s832 = smul.u32 5, %s19
          %s833 = ssub.s32 18, %s832
          %p834 = scmp.lt.s32.totalorder %s833, 5
          %s835 = scalar_select %p834, %s833, 5
          %s836 = smul.u32 2048, %s835
          %s838 = ssub.s32 10240, %s836
          %839 = vsyncadd %s825, %s838
          %p840 = scmp.ne.s32.totalorder 0, %s836
          %s841 = smul.addr %s832, 128
          %s842 = scalar_lea.hbm %s2, %s841
          %s843 = smul.u32 %s835, 8
          %s844 = smul.u32 %s843, 16
          %s845 = sshll.u32 %s828, 4
          %s846 = int_to_ptr.vmem [resolvable:$true] %s845
          %s847 = sshll.u32 %s844, 4
          %851 = dma.vmem_to_hbm [thread:$0]  (%p840), %s846, %s847, %s842, %s825, 640, 2304, %s843
        $region36: #{tpu_custom_call.1} parent=27 // pred_fallthru
          _
      $region28: #{tpu_custom_call.1} parent=5 // pred_fallthru
        _
      %p852 = scmp.le.s32.totalorder 2, %s14
      // Predicated region
      $region37: #{tpu_custom_call.1} parent=5 // pred_check
        %p853 = pneg %p852
      $region38: #{tpu_custom_call.1} parent=5 // pred_check_branch
        %855 = sbr.rel (%p853) target = $region40
      $region39: #{tpu_custom_call.1} parent=5 // pred_region
        %s856 = ssub.s32 %s14, 2
        // Predicated region
        $region41: #{tpu_custom_call.1} parent=39 // pred_check
          %p857 = pneg %p90
        $region42: #{tpu_custom_call.1} parent=39 // pred_check_branch
          %859 = sbr.rel (%p857) target = $region44
        $region43: #{tpu_custom_call.1} parent=39 // pred_region
          %s860 = sand.u32 %s75, 1
          %s861 = scalar_lea.sflag [#allocation4], %s860
          %s862 = sand.u32 %s75, 1
          %s863 = smul.addr %s862, 640
          %s864 = scalar_lea.vmem [#allocation5], %s863
          %865 = dma.done %s861, 10240
        $region44: #{tpu_custom_call.1} parent=39 // pred_fallthru
          _
      $region40: #{tpu_custom_call.1} parent=5 // pred_fallthru
        _
    $region6: #{tpu_custom_call.1} parent=1 // loop_footer
      %s18 = sadd.s32 1, %s14
    $region7: #{tpu_custom_call.1} parent=1 // loop_footer_branch
      %13 = sbr.rel target = $region3
    $region8: #{tpu_custom_call.1} parent=1 // loop_exit
      _
    %866 = vsyncpa [#allocation3], 1
    %s867 = scalar_lea.sflag [#allocation3], 1
    %868 = vsyncpa %s867, 1
    %869 = vsyncpa [#allocation4], 1
    %s870 = scalar_lea.sflag [#allocation4], 1
    %871 = vsyncpa %s870, 1

// kernel: tpu_custom_call.1
$region0: #{tpu_custom_call.1}
  #allocation0 [shape = 'u32[]', space=smem, size = 0x4, offset = 0x4, fixed_abs, tag = 'smem constant byte address 0x4 - core index']
  #allocation1 [shape = 'u32[144,128]{1,0:T(1,128)}', space=vmem, size = 0x12000, scoped, tag = 'internal scratch']
  %s0 = inlined_call_operand.vmem [shape: bf16[128,80], index: 0, kind: input, shape index: {}]
  %s1 = inlined_call_operand.hbm [shape: bf16[80,2304], index: 1, kind: input, shape index: {}]
  %s2 = inlined_call_operand.hbm [shape: f32[128,2304], index: 2, kind: output, shape index: {}]
  %s3 = sld [smem:[#allocation0]]
  $region45: #{tpu_custom_call.1} parent=0
    _
  %s5 = ssub.s32 1, %s3
  %s6 = scalar_select 0, %s5, %s3
  $region1: #{tpu_custom_call.1} parent=0
    #allocation2 [shape = 'u8[204800]{0}', space=vmem, size = 0x32000, scoped, tag = 'input window, operand 1']
    #allocation3 [shape = 's32[2]{0}', space=sflag, size = 0x8, scoped, tag = 'scoped memory for tpu_custom_call.1']
    #allocation4 [shape = 's32[2]{0}', space=sflag, size = 0x8, scoped, tag = 'scoped memory for tpu_custom_call.1']
    #allocation5 [shape = 'u8[655360]{0}', space=vmem, size = 0xa0000, scoped, tag = 'output window, operand 0']
    %7 = vsyncpa [#allocation3], 0
    %s8 = scalar_lea.sflag [#allocation3], 1
    %9 = vsyncpa %s8, 0
    %10 = vsyncpa [#allocation4], 0
    %s11 = scalar_lea.sflag [#allocation4], 1
    %12 = vsyncpa %s11, 0
    loop: start=0, step=1, limit=6
    $region2: #{tpu_custom_call.1} parent=1 // loop_pre_header
      _
    $region3: #{tpu_custom_call.1} parent=1 // loop_header
      %s14 = sphi 0, %s18
      %p15 = scmp.ge.s32.totalorder %s14, 6
      %s22 = sphi 0, %s22
      %s24 = sphi 0, %s22
      %s25 = sphi 0, %s24
      %s39 = sphi 0, %s25
      %s45 = sphi 0, %s47
      %s48 = sphi 0, %s45
      %s49 = sphi 0, %s48
      %s65 = sphi 0, %s49
      %s71 = sphi 0, %s73
      %s74 = sphi 0, %s71
      %s75 = sphi 0, %s74
      %s91 = sphi 0, %s75
    $region4: #{tpu_custom_call.1} parent=1 // loop_header_branch
      %17 = sbr.rel (%p15) target = $region8
    $region5: #{tpu_custom_call.1} parent=1 // loop_body
      %s19 = ssub.s32 %s14, 1
      %s20 = ssub.s32 %s14, 2
      %s21 = sadd.s32 %s14, 1
      %s23 = sadd.s32 %s22, 1
      %p26 = scmp.eq.s32.totalorder %s14, 3
      %p27 = scmp.ne.s32.totalorder %s22, %s24
      %p28 = scmp.eq.s32.totalorder %s14, 0
      %p29 = por %p27, %p28
      %p30 = scmp.ne.s32.totalorder %s22, %s24
      %p31 = scmp.eq.s32.totalorder %s19, 3
      %p32 = por %p30, %p31
      %p33 = scmp.ne.s32.totalorder %s24, %s25
      %p34 = scmp.eq.s32.totalorder %s19, 0
      %p35 = por %p33, %p34
      %p36 = scmp.ne.s32.totalorder %s24, %s25
      %p37 = scmp.eq.s32.totalorder %s20, 3
      %p38 = por %p36, %p37
      %p40 = scmp.ne.s32.totalorder %s25, %s39
      %p41 = scmp.eq.s32.totalorder %s20, 0
      %p42 = por %p40, %p41
      %s43 = ssub.s32 %s14, %s21
      %p44 = scmp.eq.s32.totalorder %s43, 0
      %s46 = sadd.s32 %s45, 1
      %s47 = scalar_select %p44, %s45, %s46
      %p50 = pneg %p44
      %p51 = scmp.eq.s32.totalorder %s14, 3
      %p52 = por %p50, %p51
      %p53 = scmp.ne.s32.totalorder %s45, %s48
      %p54 = scmp.eq.s32.totalorder %s14, 0
      %p55 = por %p53, %p54
      %p56 = scmp.ne.s32.totalorder %s45, %s48
      %p57 = scmp.eq.s32.totalorder %s19, 3
      %p58 = por %p56, %p57
      %p59 = scmp.ne.s32.totalorder %s48, %s49
      %p60 = scmp.eq.s32.totalorder %s19, 0
      %p61 = por %p59, %p60
      %p62 = scmp.ne.s32.totalorder %s48, %s49
      %p63 = scmp.eq.s32.totalorder %s20, 3
      %p64 = por %p62, %p63
      %p66 = scmp.ne.s32.totalorder %s49, %s65
      %p67 = scmp.eq.s32.totalorder %s20, 0
      %p68 = por %p66, %p67
      %s69 = ssub.s32 %s14, %s21
      %p70 = scmp.eq.s32.totalorder %s69, 0
      %s72 = sadd.s32 %s71, 1
      %s73 = scalar_select %p70, %s71, %s72
      %p76 = pneg %p70
      %p77 = scmp.eq.s32.totalorder %s14, 3
      %p78 = por %p76, %p77
      %p79 = scmp.ne.s32.totalorder %s71, %s74
      %p80 = scmp.eq.s32.totalorder %s14, 0
      %p81 = por %p79, %p80
      %p82 = scmp.ne.s32.totalorder %s71, %s74
      %p83 = scmp.eq.s32.totalorder %s19, 3
      %p84 = por %p82, %p83
      %p85 = scmp.ne.s32.totalorder %s74, %s75
      %p86 = scmp.eq.s32.totalorder %s19, 0
      %p87 = por %p85, %p86
      %p88 = scmp.ne.s32.totalorder %s74, %s75
      %p89 = scmp.eq.s32.totalorder %s20, 3
      %p90 = por %p88, %p89
      %p92 = scmp.ne.s32.totalorder %s75, %s91
      %p93 = scmp.eq.s32.totalorder %s20, 0
      %p94 = por %p92, %p93
      %p95 = scmp.le.s32.totalorder 1, %s14
      %p96 = scmp.lt.s32.totalorder %s14, 5
      %p97 = pnand %p95, %p96
      %p98 = pneg %p97
      // Predicated region
      $region9: #{tpu_custom_call.1} parent=5 // pred_check
        _
      $region10: #{tpu_custom_call.1} parent=5 // pred_check_branch
        %100 = sbr.rel (%p97) target = $region12
      $region11: #{tpu_custom_call.1} parent=5 // pred_region
        %s101 = ssub.s32 %s14, 1
        // Predicated region
        $region13: #{tpu_custom_call.1} parent=11 // pred_check
          %p102 = pneg %p35
        $region14: #{tpu_custom_call.1} parent=11 // pred_check_branch
          %104 = sbr.rel (%p102) target = $region16
        $region15: #{tpu_custom_call.1} parent=11 // pred_region
          _
        $region16: #{tpu_custom_call.1} parent=11 // pred_fallthru
          _
      $region12: #{tpu_custom_call.1} parent=5 // pred_fallthru
        _
      %p105 = scmp.lt.s32.totalorder %s14, 4
      // Predicated region
      $region17: #{tpu_custom_call.1} parent=5 // pred_check
        %p106 = pneg %p105
      $region18: #{tpu_custom_call.1} parent=5 // pred_check_branch
        %108 = sbr.rel (%p106) target = $region20
      $region19: #{tpu_custom_call.1} parent=5 // pred_region
        // Predicated region
        $region21: #{tpu_custom_call.1} parent=19 // pred_check
          %p109 = pneg %p55
        $region22: #{tpu_custom_call.1} parent=19 // pred_check_branch
          %111 = sbr.rel (%p109) target = $region24
        $region23: #{tpu_custom_call.1} parent=19 // pred_region
          %s112 = sand.u32 %s45, 1
          %s113 = scalar_lea.sflag [#allocation3], %s112
          %s114 = sand.u32 %s45, 1
          %s115 = smul.addr %s114, 200
          %s116 = scalar_lea.vmem [#allocation2], %s115
          %s117 = smul.u32 5, %s14
          %s118 = ssub.s32 18, %s117
          %p119 = scmp.lt.s32.totalorder %s118, 5
          %s120 = scalar_select %p119, %s118, 5
          %s121 = smul.u32 640, %s120
          %s123 = ssub.s32 3200, %s121
          %124 = vsyncadd %s113, %s123
          %p125 = scmp.ne.s32.totalorder 0, %s121
          %s126 = smul.addr %s117, 64
          %s127 = scalar_lea.hbm %s1, %s126
          %s128 = smul.u32 %s120, 4
          %s129 = smul.u32 %s128, 10
          %s130 = sshll.u32 %s116, 4
          %s131 = int_to_ptr.vmem [resolvable:$true] %s130
          %s132 = sshll.u32 %s129, 4
          %136 = dma.hbm_to_vmem [thread:$0]  (%p125), %s127, %s132, %s131, %s113, 1152, 320, %s128
        $region24: #{tpu_custom_call.1} parent=19 // pred_fallthru
          _
      $region20: #{tpu_custom_call.1} parent=5 // pred_fallthru
        _
      %p137 = scmp.le.s32.totalorder 1, %s14
      %p138 = scmp.lt.s32.totalorder %s14, 5
      %p139 = pnand %p137, %p138
      %p140 = pneg %p139
      // Predicated region
      $region25: #{tpu_custom_call.1} parent=5 // pred_check
        _
      $region26: #{tpu_custom_call.1} parent=5 // pred_check_branch
        %142 = sbr.rel (%p139) target = $region28
      $region27: #{tpu_custom_call.1} parent=5 // pred_region
        %s143 = ssub.s32 %s14, 1
        %s144 = sand.u32 %s48, 1
        %s145 = scalar_lea.sflag [#allocation3], %s144
        %s146 = sand.u32 %s48, 1
        %s147 = smul.addr %s146, 200
        %s148 = scalar_lea.vmem [#allocation2], %s147
        // Predicated region
        $region29: #{tpu_custom_call.1} parent=27 // pred_check
          %p149 = pneg %p61
        $region30: #{tpu_custom_call.1} parent=27 // pred_check_branch
          %151 = sbr.rel (%p149) target = $region32
        $region31: #{tpu_custom_call.1} parent=27 // pred_region
          %152 = dma.done %s145, 3200
        $region32: #{tpu_custom_call.1} parent=27 // pred_fallthru
          _
        %p153 = pneg %p35
        %p154 = pneg %p32
        %s155 = sand.u32 %s48, 1
        %s156 = scalar_lea.sflag [#allocation3], %s155
        %s157 = sand.u32 %s48, 1
        %s158 = smul.addr %s157, 200
        %s159 = scalar_lea.vmem [#allocation2], %s158
        %p160 = pneg %p61
        %p161 = pneg %p58
        %p162 = pneg %p87
        %p163 = pneg %p84
        %s164 = sand.u32 %s74, 1
        %s165 = scalar_lea.sflag [#allocation4], %s164
        %s166 = sand.u32 %s74, 1
        %s167 = smul.addr %s166, 640
        %s168 = scalar_lea.vmem [#allocation5], %s167
        %s169 = smul.u32 5, %s19
        %s170 = ssub.s32 18, %s169
        %p171 = scmp.lt.s32.totalorder %s170, 5
        %s172 = scalar_select %p171, %s170, 5
        %s173 = smul.u32 640, %s172
        %s174 = smul.u32 5, %s19
        %s175 = ssub.s32 18, %s174
        %p176 = scmp.lt.s32.totalorder %s175, 5
        %s177 = scalar_select %p176, %s175, 5
        %s178 = smul.u32 2048, %s177
        %v180 = vld [vmem:[%s0] sm:$0xf]
        %v181 = vld [vmem:[%s0 + $0x4] sm:$0xf]
        %v182 = vld [vmem:[%s0 + $0x8] sm:$0xf]
        %v183 = vld [vmem:[%s0 + $0xc] sm:$0xf]
        %v184 = vld [vmem:[%s0 + $0x10] sm:$0xf]
        %v185 = vld [vmem:[%s0 + $0x14] sm:$0xf]
        %v186 = vld [vmem:[%s0 + $0x18] sm:$0xf]
        %v187 = vld [vmem:[%s0 + $0x1c] sm:$0xf]
        %v188 = vld [vmem:[%s0 + $0x20] sm:$0xf]
        %v189 = vld [vmem:[%s0 + $0x24] sm:$0xf]
        %v190 = vld [vmem:[%s0 + $0x28] sm:$0xf]
        %v191 = vld [vmem:[%s0 + $0x2c] sm:$0xf]
        %v192 = vld [vmem:[%s0 + $0x30] sm:$0xf]
        %v193 = vld [vmem:[%s0 + $0x34] sm:$0xf]
        %v194 = vld [vmem:[%s0 + $0x38] sm:$0xf]
        %v195 = vld [vmem:[%s0 + $0x3c] sm:$0xf]
        %v196 = vld [vmem:[%s148] sm:$0xff]
        %v197 = vld [vmem:[%s148 + $0x8] sm:$0xff]
        %v198 = vld [vmem:[%s148 + $0x10] sm:$0xf]
        %v199 = vld [vmem:[%s148 + $0x14] sm:$0xff]
        %v200 = vld [vmem:[%s148 + $0x1c] sm:$0xff]
        %v201 = vld [vmem:[%s148 + $0x24] sm:$0xf]
        %v202 = vld [vmem:[%s148 + $0x28] sm:$0xff]
        %v203 = vld [vmem:[%s148 + $0x30] sm:$0xff]
        %v204 = vld [vmem:[%s148 + $0x38] sm:$0xf]
        %v205 = vld [vmem:[%s148 + $0x3c] sm:$0xff]
        %v206 = vld [vmem:[%s148 + $0x44] sm:$0xff]
        %v207 = vld [vmem:[%s148 + $0x4c] sm:$0xf]
        %v208 = vld [vmem:[%s148 + $0x50] sm:$0xff]
        %v209 = vld [vmem:[%s148 + $0x58] sm:$0xff]
        %v210 = vld [vmem:[%s148 + $0x60] sm:$0xf]
        %v211 = vld [vmem:[%s148 + $0x64] sm:$0xff]
        %v212 = vld [vmem:[%s148 + $0x6c] sm:$0xff]
        %v213 = vld [vmem:[%s148 + $0x74] sm:$0xf]
        %v214 = vld [vmem:[%s148 + $0x78] sm:$0xff]
        %v215 = vld [vmem:[%s148 + $0x80] sm:$0xff]
        %v216 = vld [vmem:[%s148 + $0x88] sm:$0xf]
        %v217 = vld [vmem:[%s148 + $0x8c] sm:$0xff]
        %v218 = vld [vmem:[%s148 + $0x94] sm:$0xff]
        %v219 = vld [vmem:[%s148 + $0x9c] sm:$0xf]
        %v220 = vld [vmem:[%s148 + $0xa0] sm:$0xff]
        %v221 = vld [vmem:[%s148 + $0xa8] sm:$0xff]
        %v222 = vld [vmem:[%s148 + $0xb0] sm:$0xf]
        %v223 = vld [vmem:[%s148 + $0xb4] sm:$0xff]
        %v224 = vld [vmem:[%s148 + $0xbc] sm:$0xff]
        %v225 = vld [vmem:[%s148 + $0xc4] sm:$0xf]
        %v242 = vunpack.c.l.b16 %v180
        %v243 = vunpack.c.l.b16 %v181
        %v244 = vunpack.c.l.b16 %v182
        %v245 = vunpack.c.l.b16 %v183
        %v246 = vunpack.c.l.b16 %v184
        %v247 = vunpack.c.l.b16 %v185
        %v248 = vunpack.c.l.b16 %v186
        %v249 = vunpack.c.l.b16 %v187
        %v250 = vunpack.c.l.b16 %v188
        %v251 = vunpack.c.l.b16 %v189
        %v252 = vunpack.c.l.b16 %v190
        %v253 = vunpack.c.l.b16 %v191
        %v254 = vunpack.c.l.b16 %v192
        %v255 = vunpack.c.l.b16 %v193
        %v256 = vunpack.c.l.b16 %v194
        %v257 = vunpack.c.l.b16 %v195
        %v258 = vpack.c.b16 %v243, %v242
        %v259 = vpack.c.b16 %v245, %v244
        %v260 = vpack.c.b16 %v247, %v246
        %v261 = vpack.c.b16 %v249, %v248
        %v262 = vpack.c.b16 %v251, %v250
        %v263 = vpack.c.b16 %v253, %v252
        %v264 = vpack.c.b16 %v255, %v254
        %v265 = vpack.c.b16 %v257, %v256
        %v296 = vunpack.c.l.b16 %v196
        %v297 = vunpack.c.h.b16 %v196
        %v298 = vunpack.c.l.b16 %v197
        %v299 = vunpack.c.h.b16 %v197
        %v300 = vunpack.c.l.b16 %v198
        %v301 = vunpack.c.l.b16 %v199
        %v302 = vunpack.c.h.b16 %v199
        %v303 = vunpack.c.l.b16 %v200
        %v304 = vunpack.c.h.b16 %v200
        %v305 = vunpack.c.l.b16 %v201
        %v306 = vunpack.c.l.b16 %v202
        %v307 = vunpack.c.h.b16 %v202
        %v308 = vunpack.c.l.b16 %v203
        %v309 = vunpack.c.h.b16 %v203
        %v310 = vunpack.c.l.b16 %v204
        %v311 = vunpack.c.l.b16 %v205
        %v312 = vunpack.c.h.b16 %v205
        %v313 = vunpack.c.l.b16 %v206
        %v314 = vunpack.c.h.b16 %v206
        %v315 = vunpack.c.l.b16 %v207
        %v316 = vunpack.c.l.b16 %v208
        %v317 = vunpack.c.h.b16 %v208
        %v318 = vunpack.c.l.b16 %v209
        %v319 = vunpack.c.h.b16 %v209
        %v320 = vunpack.c.l.b16 %v210
        %v321 = vunpack.c.l.b16 %v211
        %v322 = vunpack.c.h.b16 %v211
        %v323 = vunpack.c.l.b16 %v212
        %v324 = vunpack.c.h.b16 %v212
        %v325 = vunpack.c.l.b16 %v213
        %v326 = vunpack.c.l.b16 %v214
        %v327 = vunpack.c.h.b16 %v214
        %v328 = vunpack.c.l.b16 %v215
        %v329 = vunpack.c.h.b16 %v215
        %v330 = vunpack.c.l.b16 %v216
        %v331 = vunpack.c.l.b16 %v217
        %v332 = vunpack.c.h.b16 %v217
        %v333 = vunpack.c.l.b16 %v218
        %v334 = vunpack.c.h.b16 %v218
        %v335 = vunpack.c.l.b16 %v219
        %v336 = vunpack.c.l.b16 %v220
        %v337 = vunpack.c.h.b16 %v220
        %v338 = vunpack.c.l.b16 %v221
        %v339 = vunpack.c.h.b16 %v221
        %v340 = vunpack.c.l.b16 %v222
        %v341 = vunpack.c.l.b16 %v223
        %v342 = vunpack.c.h.b16 %v223
        %v343 = vunpack.c.l.b16 %v224
        %v344 = vunpack.c.h.b16 %v224
        %v345 = vunpack.c.l.b16 %v225
        %v346 = vpack.c.b16 %v301, %v296
        %v347 = vpack.c.b16 %v302, %v297
        %v348 = vpack.c.b16 %v303, %v298
        %v349 = vpack.c.b16 %v304, %v299
        %v350 = vpack.c.b16 %v305, %v300
        %v351 = vpack.c.b16 %v311, %v306
        %v352 = vpack.c.b16 %v312, %v307
        %v353 = vpack.c.b16 %v313, %v308
        %v354 = vpack.c.b16 %v314, %v309
        %v355 = vpack.c.b16 %v315, %v310
        %v356 = vpack.c.b16 %v321, %v316
        %v357 = vpack.c.b16 %v322, %v317
        %v358 = vpack.c.b16 %v323, %v318
        %v359 = vpack.c.b16 %v324, %v319
        %v360 = vpack.c.b16 %v325, %v320
        %v361 = vpack.c.b16 %v331, %v326
        %v362 = vpack.c.b16 %v332, %v327
        %v363 = vpack.c.b16 %v333, %v328
        %v364 = vpack.c.b16 %v334, %v329
        %v365 = vpack.c.b16 %v335, %v330
        %v366 = vpack.c.b16 %v341, %v336
        %v367 = vpack.c.b16 %v342, %v337
        %v368 = vpack.c.b16 %v343, %v338
        %v369 = vpack.c.b16 %v344, %v339
        %v370 = vpack.c.b16 %v345, %v340
        %vm396 = vcmask 654336
        %v398 = vsel %vm396, %v258, 0
        %v401 = vsel %vm396, %v259, 0
        %v404 = vsel %vm396, %v260, 0
        %v407 = vsel %vm396, %v261, 0
        %v410 = vsel %vm396, %v262, 0
        %v413 = vsel %vm396, %v263, 0
        %v416 = vsel %vm396, %v264, 0
        %v419 = vsel %vm396, %v265, 0
        %421 = vmatprep.subr.bf16.mxu0 %v347
        %422 = vmatpush1.bf16.msra.mxu0 %v346
        %423 = vmatprep.subr.bf16.mxu0 %v352
        %424 = vmatpush1.bf16.msra.mxu0 %v351
        %425 = vmatprep.subr.bf16.mxu0 %v357
        %426 = vmatpush1.bf16.msra.mxu0 %v356
        %427 = vmatprep.subr.bf16.mxu0 %v362
        %428 = vmatpush1.bf16.msra.mxu0 %v361
        %429 = vmatprep.subr.bf16.mxu0 %v367
        %430 = vmatpush1.bf16.msra.mxu0 %v366
        %431 = vmatprep.subr.bf16.mxu0 0
        %432 = vmatpush1.bf16.msra.mxu0 0
        %433 = vmatprep.subr.bf16.mxu0 0
        %434 = vmatpush1.bf16.msra.mxu0 0
        %435 = vmatprep.subr.bf16.mxu0 0
        %436 = vmatpush1.bf16.msra.mxu0 0
        %437 = vmatprep.subr.bf16.mxu0 0
        %438 = vmatpush1.bf16.msra.mxu0 0
        %439 = vmatprep.subr.bf16.mxu0 0
        %440 = vmatpush1.bf16.msra.mxu0 0
        %441 = vmatprep.subr.bf16.mxu0 0
        %442 = vmatpush1.bf16.msra.mxu0 0
        %443 = vmatprep.subr.bf16.mxu0 0
        %444 = vmatpush1.bf16.msra.mxu0 0
        %445 = vmatprep.subr.bf16.mxu0 0
        %446 = vmatpush1.bf16.msra.mxu0 0
        %447 = vmatprep.subr.bf16.mxu0 0
        %448 = vmatpush1.bf16.msra.mxu0 0
        %449 = vmatprep.subr.bf16.mxu0 0
        %450 = vmatpush1.bf16.msra.mxu0 0
        %451 = vmatprep.subr.bf16.mxu0 0
        %452 = vmatpush1.bf16.msra.mxu0 0
        %453 = vmatprep.mubr.bf16.mxu0 0
        %454 = vmatmul.mubr.bf16.gmra.mrb[0].mxu0 %v398
        %v455 = vpop.f32.mrb[0].mxu0
        %v456 = vadd.f32 0.0, %v455
        %v457 = vpop.f32.mrb[0].mxu0
        %v458 = vadd.f32 0.0, %v457
        %v459 = vpop.f32.mrb[0].mxu0
        %v460 = vadd.f32 0.0, %v459
        %v461 = vpop.f32.mrb[0].mxu0
        %v462 = vadd.f32 0.0, %v461
        %463 = vmatprep.mubr.bf16.mxu0 0
        %464 = vmatmul.mubr.bf16.gmra.mrb[0].mxu0 %v401
        %v465 = vpop.f32.mrb[0].mxu0
        %v466 = vadd.f32 0.0, %v465
        %v467 = vpop.f32.mrb[0].mxu0
        %v468 = vadd.f32 0.0, %v467
        %v469 = vpop.f32.mrb[0].mxu0
        %v470 = vadd.f32 0.0, %v469
        %v471 = vpop.f32.mrb[0].mxu0
        %v472 = vadd.f32 0.0, %v471
        %473 = vmatprep.mubr.bf16.mxu0 0
        %474 = vmatmul.mubr.bf16.gmra.mrb[0].mxu0 %v404
        %v475 = vpop.f32.mrb[0].mxu0
        %v476 = vadd.f32 0.0, %v475
        %v477 = vpop.f32.mrb[0].mxu0
        %v478 = vadd.f32 0.0, %v477
        %v479 = vpop.f32.mrb[0].mxu0
        %v480 = vadd.f32 0.0, %v479
        %v481 = vpop.f32.mrb[0].mxu0
        %v482 = vadd.f32 0.0, %v481
        %483 = vmatprep.mubr.bf16.mxu0 0
        %484 = vmatmul.mubr.bf16.gmra.mrb[0].mxu0 %v407
        %v485 = vpop.f32.mrb[0].mxu0
        %v486 = vadd.f32 0.0, %v485
        %v487 = vpop.f32.mrb[0].mxu0
        %v488 = vadd.f32 0.0, %v487
        %v489 = vpop.f32.mrb[0].mxu0
        %v490 = vadd.f32 0.0, %v489
        %v491 = vpop.f32.mrb[0].mxu0
        %v492 = vadd.f32 0.0, %v491
        %493 = vmatprep.mubr.bf16.mxu0 0
        %494 = vmatmul.mubr.bf16.gmra.mrb[0].mxu0 %v410
        %v495 = vpop.f32.mrb[0].mxu0
        %v496 = vadd.f32 0.0, %v495
        %v497 = vpop.f32.mrb[0].mxu0
        %v498 = vadd.f32 0.0, %v497
        %v499 = vpop.f32.mrb[0].mxu0
        %v500 = vadd.f32 0.0, %v499
        %v501 = vpop.f32.mrb[0].mxu0
        %v502 = vadd.f32 0.0, %v501
        %503 = vmatprep.mubr.bf16.mxu0 0
        %504 = vmatmul.mubr.bf16.gmra.mrb[0].mxu0 %v413
        %v505 = vpop.f32.mrb[0].mxu0
        %v506 = vadd.f32 0.0, %v505
        %v507 = vpop.f32.mrb[0].mxu0
        %v508 = vadd.f32 0.0, %v507
        %v509 = vpop.f32.mrb[0].mxu0
        %v510 = vadd.f32 0.0, %v509
        %v511 = vpop.f32.mrb[0].mxu0
        %v512 = vadd.f32 0.0, %v511
        %513 = vmatprep.mubr.bf16.mxu0 0
        %514 = vmatmul.mubr.bf16.gmra.mrb[0].mxu0 %v416
        %v515 = vpop.f32.mrb[0].mxu0
        %v516 = vadd.f32 0.0, %v515
        %v517 = vpop.f32.mrb[0].mxu0
        %v518 = vadd.f32 0.0, %v517
        %v519 = vpop.f32.mrb[0].mxu0
        %v520 = vadd.f32 0.0, %v519
        %v521 = vpop.f32.mrb[0].mxu0
        %v522 = vadd.f32 0.0, %v521
        %523 = vmatprep.mubr.bf16.mxu0 0
        %524 = vmatmul.mubr.bf16.gmra.mrb[0].mxu0 %v419
        %v525 = vpop.f32.mrb[0].mxu0
        %v526 = vadd.f32 0.0, %v525
        %v527 = vpop.f32.mrb[0].mxu0
        %v528 = vadd.f32 0.0, %v527
        %v529 = vpop.f32.mrb[0].mxu0
        %v530 = vadd.f32 0.0, %v529
        %v531 = vpop.f32.mrb[0].mxu0
        %v532 = vadd.f32 0.0, %v531
        %533 = vdwg.mxu0
        %534 = vmatprep.subr.bf16.mxu0 %v349
        %535 = vmatpush1.bf16.msra.mxu0 %v348
        %536 = vmatprep.subr.bf16.mxu0 %v354
        %537 = vmatpush1.bf16.msra.mxu0 %v353
        %538 = vmatprep.subr.bf16.mxu0 %v359
        %539 = vmatpush1.bf16.msra.mxu0 %v358
        %540 = vmatprep.subr.bf16.mxu0 %v364
        %541 = vmatpush1.bf16.msra.mxu0 %v363
        %542 = vmatprep.subr.bf16.mxu0 %v369
        %543 = vmatpush1.bf16.msra.mxu0 %v368
        %544 = vmatprep.subr.bf16.mxu0 0
        %545 = vmatpush1.bf16.msra.mxu0 0
        %546 = vmatprep.subr.bf16.mxu0 0
        %547 = vmatpush1.bf16.msra.mxu0 0
        %548 = vmatprep.subr.bf16.mxu0 0
        %549 = vmatpush1.bf16.msra.mxu0 0
        %550 = vmatprep.subr.bf16.mxu0 0
        %551 = vmatpush1.bf16.msra.mxu0 0
        %552 = vmatprep.subr.bf16.mxu0 0
        %553 = vmatpush1.bf16.msra.mxu0 0
        %554 = vmatprep.subr.bf16.mxu0 0
        %555 = vmatpush1.bf16.msra.mxu0 0
        %556 = vmatprep.subr.bf16.mxu0 0
        %557 = vmatpush1.bf16.msra.mxu0 0
        %558 = vmatprep.subr.bf16.mxu0 0
        %559 = vmatpush1.bf16.msra.mxu0 0
        %560 = vmatprep.subr.bf16.mxu0 0
        %561 = vmatpush1.bf16.msra.mxu0 0
        %562 = vmatprep.subr.bf16.mxu0 0
        %563 = vmatpush1.bf16.msra.mxu0 0
        %564 = vmatprep.subr.bf16.mxu0 0
        %565 = vmatpush1.bf16.msra.mxu0 0
        %566 = vmatprep.mubr.bf16.mxu0 0
        %567 = vmatmul.mubr.bf16.gmra.mrb[0].mxu0 %v398
        %v568 = vpop.f32.mrb[0].mxu0
        %v569 = vadd.f32 0.0, %v568
        %v570 = vpop.f32.mrb[0].mxu0
        %v571 = vadd.f32 0.0, %v570
        %v572 = vpop.f32.mrb[0].mxu0
        %v573 = vadd.f32 0.0, %v572
        %v574 = vpop.f32.mrb[0].mxu0
        %v575 = vadd.f32 0.0, %v574
        %576 = vmatprep.mubr.bf16.mxu0 0
        %577 = vmatmul.mubr.bf16.gmra.mrb[0].mxu0 %v401
        %v578 = vpop.f32.mrb[0].mxu0
        %v579 = vadd.f32 0.0, %v578
        %v580 = vpop.f32.mrb[0].mxu0
        %v581 = vadd.f32 0.0, %v580
        %v582 = vpop.f32.mrb[0].mxu0
        %v583 = vadd.f32 0.0, %v582
        %v584 = vpop.f32.mrb[0].mxu0
        %v585 = vadd.f32 0.0, %v584
        %586 = vmatprep.mubr.bf16.mxu0 0
        %587 = vmatmul.mubr.bf16.gmra.mrb[0].mxu0 %v404
        %v588 = vpop.f32.mrb[0].mxu0
        %v589 = vadd.f32 0.0, %v588
        %v590 = vpop.f32.mrb[0].mxu0
        %v591 = vadd.f32 0.0, %v590
        %v592 = vpop.f32.mrb[0].mxu0
        %v593 = vadd.f32 0.0, %v592
        %v594 = vpop.f32.mrb[0].mxu0
        %v595 = vadd.f32 0.0, %v594
        %596 = vmatprep.mubr.bf16.mxu0 0
        %597 = vmatmul.mubr.bf16.gmra.mrb[0].mxu0 %v407
        %v598 = vpop.f32.mrb[0].mxu0
        %v599 = vadd.f32 0.0, %v598
        %v600 = vpop.f32.mrb[0].mxu0
        %v601 = vadd.f32 0.0, %v600
        %v602 = vpop.f32.mrb[0].mxu0
        %v603 = vadd.f32 0.0, %v602
        %v604 = vpop.f32.mrb[0].mxu0
        %v605 = vadd.f32 0.0, %v604
        %606 = vmatprep.mubr.bf16.mxu0 0
        %607 = vmatmul.mubr.bf16.gmra.mrb[0].mxu0 %v410
        %v608 = vpop.f32.mrb[0].mxu0
        %v609 = vadd.f32 0.0, %v608
        %v610 = vpop.f32.mrb[0].mxu0
        %v611 = vadd.f32 0.0, %v610
        %v612 = vpop.f32.mrb[0].mxu0
        %v613 = vadd.f32 0.0, %v612
        %v614 = vpop.f32.mrb[0].mxu0
        %v615 = vadd.f32 0.0, %v614
        %616 = vmatprep.mubr.bf16.mxu0 0
        %617 = vmatmul.mubr.bf16.gmra.mrb[0].mxu0 %v413
        %v618 = vpop.f32.mrb[0].mxu0
        %v619 = vadd.f32 0.0, %v618
        %v620 = vpop.f32.mrb[0].mxu0
        %v621 = vadd.f32 0.0, %v620
        %v622 = vpop.f32.mrb[0].mxu0
        %v623 = vadd.f32 0.0, %v622
        %v624 = vpop.f32.mrb[0].mxu0
        %v625 = vadd.f32 0.0, %v624
        %626 = vmatprep.mubr.bf16.mxu0 0
        %627 = vmatmul.mubr.bf16.gmra.mrb[0].mxu0 %v416
        %v628 = vpop.f32.mrb[0].mxu0
        %v629 = vadd.f32 0.0, %v628
        %v630 = vpop.f32.mrb[0].mxu0
        %v631 = vadd.f32 0.0, %v630
        %v632 = vpop.f32.mrb[0].mxu0
        %v633 = vadd.f32 0.0, %v632
        %v634 = vpop.f32.mrb[0].mxu0
        %v635 = vadd.f32 0.0, %v634
        %636 = vmatprep.mubr.bf16.mxu0 0
        %637 = vmatmul.mubr.bf16.gmra.mrb[0].mxu0 %v419
        %v638 = vpop.f32.mrb[0].mxu0
        %v639 = vadd.f32 0.0, %v638
        %v640 = vpop.f32.mrb[0].mxu0
        %v641 = vadd.f32 0.0, %v640
        %v642 = vpop.f32.mrb[0].mxu0
        %v643 = vadd.f32 0.0, %v642
        %v644 = vpop.f32.mrb[0].mxu0
        %v645 = vadd.f32 0.0, %v644
        %646 = vdwg.mxu0
        %647 = vmatprep.subr.bf16.mxu0 0
        %648 = vmatpush1.bf16.msra.mxu0 %v350
        %649 = vmatprep.subr.bf16.mxu0 0
        %650 = vmatpush1.bf16.msra.mxu0 %v355
        %651 = vmatprep.subr.bf16.mxu0 0
        %652 = vmatpush1.bf16.msra.mxu0 %v360
        %653 = vmatprep.subr.bf16.mxu0 0
        %654 = vmatpush1.bf16.msra.mxu0 %v365
        %655 = vmatprep.subr.bf16.mxu0 0
        %656 = vmatpush1.bf16.msra.mxu0 %v370
        %657 = vmatprep.subr.bf16.mxu0 0
        %658 = vmatpush1.bf16.msra.mxu0 0
        %659 = vmatprep.subr.bf16.mxu0 0
        %660 = vmatpush1.bf16.msra.mxu0 0
        %661 = vmatprep.subr.bf16.mxu0 0
        %662 = vmatpush1.bf16.msra.mxu0 0
        %663 = vmatprep.subr.bf16.mxu0 0
        %664 = vmatpush1.bf16.msra.mxu0 0
        %665 = vmatprep.subr.bf16.mxu0 0
        %666 = vmatpush1.bf16.msra.mxu0 0
        %667 = vmatprep.subr.bf16.mxu0 0
        %668 = vmatpush1.bf16.msra.mxu0 0
        %669 = vmatprep.subr.bf16.mxu0 0
        %670 = vmatpush1.bf16.msra.mxu0 0
        %671 = vmatprep.subr.bf16.mxu0 0
        %672 = vmatpush1.bf16.msra.mxu0 0
        %673 = vmatprep.subr.bf16.mxu0 0
        %674 = vmatpush1.bf16.msra.mxu0 0
        %675 = vmatprep.subr.bf16.mxu0 0
        %676 = vmatpush1.bf16.msra.mxu0 0
        %677 = vmatprep.subr.bf16.mxu0 0
        %678 = vmatpush1.bf16.msra.mxu0 0
        %679 = vmatprep.mubr.bf16.mxu0 0
        %680 = vmatmul.mubr.bf16.gmra.mrb[0].mxu0 %v398
        %v681 = vpop.f32.mrb[0].mxu0
        %v682 = vadd.f32 0.0, %v681
        %v683 = vpop.f32.mrb[0].mxu0
        %v684 = vpop.f32.mrb[0].mxu0
        %v685 = vadd.f32 0.0, %v684
        %v686 = vpop.f32.mrb[0].mxu0
        %687 = vmatprep.mubr.bf16.mxu0 0
        %688 = vmatmul.mubr.bf16.gmra.mrb[0].mxu0 %v401
        %v689 = vpop.f32.mrb[0].mxu0
        %v690 = vadd.f32 0.0, %v689
        %v691 = vpop.f32.mrb[0].mxu0
        %v692 = vpop.f32.mrb[0].mxu0
        %v693 = vadd.f32 0.0, %v692
        %v694 = vpop.f32.mrb[0].mxu0
        %695 = vmatprep.mubr.bf16.mxu0 0
        %696 = vmatmul.mubr.bf16.gmra.mrb[0].mxu0 %v404
        %v697 = vpop.f32.mrb[0].mxu0
        %v698 = vadd.f32 0.0, %v697
        %v699 = vpop.f32.mrb[0].mxu0
        %v700 = vpop.f32.mrb[0].mxu0
        %v701 = vadd.f32 0.0, %v700
        %v702 = vpop.f32.mrb[0].mxu0
        %703 = vmatprep.mubr.bf16.mxu0 0
        %704 = vmatmul.mubr.bf16.gmra.mrb[0].mxu0 %v407
        %v705 = vpop.f32.mrb[0].mxu0
        %v706 = vadd.f32 0.0, %v705
        %v707 = vpop.f32.mrb[0].mxu0
        %v708 = vpop.f32.mrb[0].mxu0
        %v709 = vadd.f32 0.0, %v708
        %v710 = vpop.f32.mrb[0].mxu0
        %711 = vmatprep.mubr.bf16.mxu0 0
        %712 = vmatmul.mubr.bf16.gmra.mrb[0].mxu0 %v410
        %v713 = vpop.f32.mrb[0].mxu0
        %v714 = vadd.f32 0.0, %v713
        %v715 = vpop.f32.mrb[0].mxu0
        %v716 = vpop.f32.mrb[0].mxu0
        %v717 = vadd.f32 0.0, %v716
        %v718 = vpop.f32.mrb[0].mxu0
        %719 = vmatprep.mubr.bf16.mxu0 0
        %720 = vmatmul.mubr.bf16.gmra.mrb[0].mxu0 %v413
        %v721 = vpop.f32.mrb[0].mxu0
        %v722 = vadd.f32 0.0, %v721
        %v723 = vpop.f32.mrb[0].mxu0
        %v724 = vpop.f32.mrb[0].mxu0
        %v725 = vadd.f32 0.0, %v724
        %v726 = vpop.f32.mrb[0].mxu0
        %727 = vmatprep.mubr.bf16.mxu0 0
        %728 = vmatmul.mubr.bf16.gmra.mrb[0].mxu0 %v416
        %v729 = vpop.f32.mrb[0].mxu0
        %v730 = vadd.f32 0.0, %v729
        %v731 = vpop.f32.mrb[0].mxu0
        %v732 = vpop.f32.mrb[0].mxu0
        %v733 = vadd.f32 0.0, %v732
        %v734 = vpop.f32.mrb[0].mxu0
        %735 = vmatprep.mubr.bf16.mxu0 0
        %736 = vmatmul.mubr.bf16.gmra.mrb[0].mxu0 %v419
        %v737 = vpop.f32.mrb[0].mxu0
        %v738 = vadd.f32 0.0, %v737
        %v739 = vpop.f32.mrb[0].mxu0
        %v740 = vpop.f32.mrb[0].mxu0
        %v741 = vadd.f32 0.0, %v740
        %v742 = vpop.f32.mrb[0].mxu0
        %743 = vdwg.mxu0
        %744 = vst [vmem:[%s168] sm:$0xff] %v456
        %745 = vst [vmem:[%s168 + $0x8] sm:$0xff] %v458
        %746 = vst [vmem:[%s168 + $0x10] sm:$0xff] %v569
        %747 = vst [vmem:[%s168 + $0x18] sm:$0xff] %v571
        %748 = vst [vmem:[%s168 + $0x20] sm:$0xff] %v682
        %749 = vst [vmem:[%s168 + $0x28] sm:$0xff] %v460
        %750 = vst [vmem:[%s168 + $0x30] sm:$0xff] %v462
        %751 = vst [vmem:[%s168 + $0x38] sm:$0xff] %v573
        %752 = vst [vmem:[%s168 + $0x40] sm:$0xff] %v575
        %753 = vst [vmem:[%s168 + $0x48] sm:$0xff] %v685
        %754 = vst [vmem:[%s168 + $0x50] sm:$0xff] %v466
        %755 = vst [vmem:[%s168 + $0x58] sm:$0xff] %v468
        %756 = vst [vmem:[%s168 + $0x60] sm:$0xff] %v579
        %757 = vst [vmem:[%s168 + $0x68] sm:$0xff] %v581
        %758 = vst [vmem:[%s168 + $0x70] sm:$0xff] %v690
        %759 = vst [vmem:[%s168 + $0x78] sm:$0xff] %v470
        %760 = vst [vmem:[%s168 + $0x80] sm:$0xff] %v472
        %761 = vst [vmem:[%s168 + $0x88] sm:$0xff] %v583
        %762 = vst [vmem:[%s168 + $0x90] sm:$0xff] %v585
        %763 = vst [vmem:[%s168 + $0x98] sm:$0xff] %v693
        %764 = vst [vmem:[%s168 + $0xa0] sm:$0xff] %v476
        %765 = vst [vmem:[%s168 + $0xa8] sm:$0xff] %v478
        %766 = vst [vmem:[%s168 + $0xb0] sm:$0xff] %v589
        %767 = vst [vmem:[%s168 + $0xb8] sm:$0xff] %v591
        %768 = vst [vmem:[%s168 + $0xc0] sm:$0xff] %v698
        %769 = vst [vmem:[%s168 + $0xc8] sm:$0xff] %v480
        %770 = vst [vmem:[%s168 + $0xd0] sm:$0xff] %v482
        %771 = vst [vmem:[%s168 + $0xd8] sm:$0xff] %v593
        %772 = vst [vmem:[%s168 + $0xe0] sm:$0xff] %v595
        %773 = vst [vmem:[%s168 + $0xe8] sm:$0xff] %v701
        %774 = vst [vmem:[%s168 + $0xf0] sm:$0xff] %v486
        %775 = vst [vmem:[%s168 + $0xf8] sm:$0xff] %v488
        %776 = vst [vmem:[%s168 + $0x100] sm:$0xff] %v599
        %777 = vst [vmem:[%s168 + $0x108] sm:$0xff] %v601
        %778 = vst [vmem:[%s168 + $0x110] sm:$0xff] %v706
        %779 = vst [vmem:[%s168 + $0x118] sm:$0xff] %v490
        %780 = vst [vmem:[%s168 + $0x120] sm:$0xff] %v492
        %781 = vst [vmem:[%s168 + $0x128] sm:$0xff] %v603
        %782 = vst [vmem:[%s168 + $0x130] sm:$0xff] %v605
        %783 = vst [vmem:[%s168 + $0x138] sm:$0xff] %v709
        %784 = vst [vmem:[%s168 + $0x140] sm:$0xff] %v496
        %785 = vst [vmem:[%s168 + $0x148] sm:$0xff] %v498
        %786 = vst [vmem:[%s168 + $0x150] sm:$0xff] %v609
        %787 = vst [vmem:[%s168 + $0x158] sm:$0xff] %v611
        %788 = vst [vmem:[%s168 + $0x160] sm:$0xff] %v714
        %789 = vst [vmem:[%s168 + $0x168] sm:$0xff] %v500
        %790 = vst [vmem:[%s168 + $0x170] sm:$0xff] %v502
        %791 = vst [vmem:[%s168 + $0x178] sm:$0xff] %v613
        %792 = vst [vmem:[%s168 + $0x180] sm:$0xff] %v615
        %793 = vst [vmem:[%s168 + $0x188] sm:$0xff] %v717
        %794 = vst [vmem:[%s168 + $0x190] sm:$0xff] %v506
        %795 = vst [vmem:[%s168 + $0x198] sm:$0xff] %v508
        %796 = vst [vmem:[%s168 + $0x1a0] sm:$0xff] %v619
        %797 = vst [vmem:[%s168 + $0x1a8] sm:$0xff] %v621
        %798 = vst [vmem:[%s168 + $0x1b0] sm:$0xff] %v722
        %799 = vst [vmem:[%s168 + $0x1b8] sm:$0xff] %v510
        %800 = vst [vmem:[%s168 + $0x1c0] sm:$0xff] %v512
        %801 = vst [vmem:[%s168 + $0x1c8] sm:$0xff] %v623
        %802 = vst [vmem:[%s168 + $0x1d0] sm:$0xff] %v625
        %803 = vst [vmem:[%s168 + $0x1d8] sm:$0xff] %v725
        %804 = vst [vmem:[%s168 + $0x1e0] sm:$0xff] %v516
        %805 = vst [vmem:[%s168 + $0x1e8] sm:$0xff] %v518
        %806 = vst [vmem:[%s168 + $0x1f0] sm:$0xff] %v629
        %807 = vst [vmem:[%s168 + $0x1f8] sm:$0xff] %v631
        %808 = vst [vmem:[%s168 + $0x200] sm:$0xff] %v730
        %809 = vst [vmem:[%s168 + $0x208] sm:$0xff] %v520
        %810 = vst [vmem:[%s168 + $0x210] sm:$0xff] %v522
        %811 = vst [vmem:[%s168 + $0x218] sm:$0xff] %v633
        %812 = vst [vmem:[%s168 + $0x220] sm:$0xff] %v635
        %813 = vst [vmem:[%s168 + $0x228] sm:$0xff] %v733
        %814 = vst [vmem:[%s168 + $0x230] sm:$0xff] %v526
        %815 = vst [vmem:[%s168 + $0x238] sm:$0xff] %v528
        %816 = vst [vmem:[%s168 + $0x240] sm:$0xff] %v639
        %817 = vst [vmem:[%s168 + $0x248] sm:$0xff] %v641
        %818 = vst [vmem:[%s168 + $0x250] sm:$0xff] %v738
        %819 = vst [vmem:[%s168 + $0x258] sm:$0xff] %v530
        %820 = vst [vmem:[%s168 + $0x260] sm:$0xff] %v532
        %821 = vst [vmem:[%s168 + $0x268] sm:$0xff] %v643
        %822 = vst [vmem:[%s168 + $0x270] sm:$0xff] %v645
        %823 = vst [vmem:[%s168 + $0x278] sm:$0xff] %v741
        %s824 = sand.u32 %s74, 1
        %s825 = scalar_lea.sflag [#allocation4], %s824
        %s826 = sand.u32 %s74, 1
        %s827 = smul.addr %s826, 640
        %s828 = scalar_lea.vmem [#allocation5], %s827
        // Predicated region
        $region33: #{tpu_custom_call.1} parent=27 // pred_check
          %p829 = pneg %p84
        $region34: #{tpu_custom_call.1} parent=27 // pred_check_branch
          %831 = sbr.rel (%p829) target = $region36
        $region35: #{tpu_custom_call.1} parent=27 // pred_region
          %s832 = smul.u32 5, %s19
          %s833 = ssub.s32 18, %s832
          %p834 = scmp.lt.s32.totalorder %s833, 5
          %s835 = scalar_select %p834, %s833, 5
          %s836 = smul.u32 2048, %s835
          %s838 = ssub.s32 10240, %s836
          %839 = vsyncadd %s825, %s838
          %p840 = scmp.ne.s32.totalorder 0, %s836
          %s841 = smul.addr %s832, 128
          %s842 = scalar_lea.hbm %s2, %s841
          %s843 = smul.u32 %s835, 8
          %s844 = smul.u32 %s843, 16
          %s845 = sshll.u32 %s828, 4
          %s846 = int_to_ptr.vmem [resolvable:$true] %s845
          %s847 = sshll.u32 %s844, 4
          %851 = dma.vmem_to_hbm [thread:$0]  (%p840), %s846, %s847, %s842, %s825, 640, 2304, %s843
        $region36: #{tpu_custom_call.1} parent=27 // pred_fallthru
          _
      $region28: #{tpu_custom_call.1} parent=5 // pred_fallthru
        _
      %p852 = scmp.le.s32.totalorder 2, %s14
      // Predicated region
      $region37: #{tpu_custom_call.1} parent=5 // pred_check
        %p853 = pneg %p852
      $region38: #{tpu_custom_call.1} parent=5 // pred_check_branch
        %855 = sbr.rel (%p853) target = $region40
      $region39: #{tpu_custom_call.1} parent=5 // pred_region
        %s856 = ssub.s32 %s14, 2
        // Predicated region
        $region41: #{tpu_custom_call.1} parent=39 // pred_check
          %p857 = pneg %p90
        $region42: #{tpu_custom_call.1} parent=39 // pred_check_branch
          %859 = sbr.rel (%p857) target = $region44
        $region43: #{tpu_custom_call.1} parent=39 // pred_region
          %s860 = sand.u32 %s75, 1
          %s861 = scalar_lea.sflag [#allocation4], %s860
          %s862 = sand.u32 %s75, 1
          %s863 = smul.addr %s862, 640
          %s864 = scalar_lea.vmem [#allocation5], %s863
          %865 = dma.done %s861, 10240
        $region44: #{tpu_custom_call.1} parent=39 // pred_fallthru
          _
      $region40: #{tpu_custom_call.1} parent=5 // pred_fallthru
        _
    $region6: #{tpu_custom_call.1} parent=1 // loop_footer
      %s18 = sadd.s32 1, %s14
    $region7: #{tpu_custom_call.1} parent=1 // loop_footer_branch
      %13 = sbr.rel target = $region3
    $region8: #{tpu_custom_call.1} parent=1 // loop_exit
      _
    %866 = vsyncpa [#allocation3], 1
    %s867 = scalar_lea.sflag [#allocation3], 1
    %868 = vsyncpa %s867, 1
    %869 = vsyncpa [#allocation4], 1
    %s870 = scalar_lea.sflag [#allocation4], 1
    %871 = vsyncpa %s870, 1

</llo_original>
